<compile_context>
chip_gen: v5e
topology: v5e:2x2
jax: 0.10.0
libtpu: 0.0.40
codegen_flags: <defaults>
</compile_context>

<pallas_src>
import functools
import math

import jax
import jax.numpy as jnp
from jax import lax
from jax.experimental import pallas as pl
from jax.experimental.pallas import tpu as pltpu

LN_EPS = 1e-5  # PyTorch LayerNorm default eps


# ---------------------------------------------------------------- helpers ---

def _layernorm(y, g, b):
    # biased variance, matching torch.nn.LayerNorm
    mean = jnp.mean(y, axis=-1, keepdims=True)
    var = jnp.mean((y - mean) ** 2, axis=-1, keepdims=True)
    return (y - mean) * lax.rsqrt(var + LN_EPS) * g + b


# ----------------------------------------------------------- fused kernel ---

def _fused_model_kernel(
    x_ref, pe_ref, emb_w_ref, emb_b_ref,
    in_w_ref, in_b_ref, out_w_ref, out_b_ref, ln1_g_ref, ln1_b_ref,
    w1_ref, b1_ref, w2_ref, b2_ref, ln2_g_ref, ln2_b_ref,
    dec_w_ref, dec_b_ref,
    o_ref,
    attn_scratch,
    *, nhead, num_layers,
):
    # -------- embedding + positional encoding (one batch element) ----------
    x = x_ref[0]                                                    # (S, Fi)
    y = jnp.dot(x, emb_w_ref[...], preferred_element_type=jnp.float32)
    y = y + emb_b_ref[...] + pe_ref[...]                            # (S, D)
    S, D = y.shape
    dh = D // nhead
    scale = 1.0 / math.sqrt(dh)

    for layer in range(num_layers):
        # ---------------- self-attention block (post-norm) -----------------
        qkv = (jnp.dot(y, in_w_ref[layer], preferred_element_type=jnp.float32)
               + in_b_ref[layer])                                   # (S, 3D)
        q = qkv[:, :D] * scale            # fold 1/sqrt(dh) into q
        k = qkv[:, D:2 * D]
        v = qkv[:, 2 * D:]

        # TODO(synk): at production shapes move heads to a fori_loop / grid
        # axis and stream KV flash-style instead of the full (S, S) scores.
        for h in range(nhead):
            sl = slice(h * dh, (h + 1) * dh)
            s = lax.dot_general(                                    # (S, S)
                q[:, sl], k[:, sl],
                dimension_numbers=(((1,), (1,)), ((), ())),
                preferred_element_type=jnp.float32)
            s = s - jnp.max(s, axis=-1, keepdims=True)
            p = jnp.exp(s)
            p = p * pl.reciprocal(jnp.sum(p, axis=-1, keepdims=True))
            # logical concat of heads into VMEM scratch
            attn_scratch[:, sl] = jnp.dot(
                p, v[:, sl], preferred_element_type=jnp.float32)    # (S, dh)

        attn = (jnp.dot(attn_scratch[...], out_w_ref[layer],
                        preferred_element_type=jnp.float32)
                + out_b_ref[layer])
        y = _layernorm(y + attn, ln1_g_ref[layer], ln1_b_ref[layer])

        # ------------------------- FFN block --------------------------------
        hdn = (jnp.dot(y, w1_ref[layer], preferred_element_type=jnp.float32)
               + b1_ref[layer])
        hdn = jnp.maximum(hdn, 0.0)
        f = (jnp.dot(hdn, w2_ref[layer], preferred_element_type=jnp.float32)
             + b2_ref[layer])
        y = _layernorm(y + f, ln2_g_ref[layer], ln2_b_ref[layer])

    # -------- decoder linear (lane-padded to 128 for a dense store) --------
    o_ref[0] = (jnp.dot(y, dec_w_ref[...], preferred_element_type=jnp.float32)
                + dec_b_ref[...])


# ------------------------------------------------------------ model glue ---

def positional_encoding_table(d_model, max_len=100):
    # identical construction to the PyTorch PositionalEncoding buffer
    position = jnp.arange(0, max_len, dtype=jnp.float32)[:, None]
    div_term = jnp.exp(
        jnp.arange(0, d_model, 2, dtype=jnp.float32)
        * (-math.log(10000.0) / d_model))
    pe = jnp.zeros((max_len, d_model), dtype=jnp.float32)
    pe = pe.at[:, 0::2].set(jnp.sin(position * div_term))
    pe = pe.at[:, 1::2].set(jnp.cos(position * div_term))
    return pe  # (max_len, d_model)


def transformer_layer_forward(src, params, nhead, num_layers):
    # src: (S, B, Fi) sequence-first (PyTorch batch_first=False)
    S, B, Fi = src.shape
    D = params["emb_w"].shape[1]
    Fp = params["dec_w_pad"].shape[1]

    x = jnp.transpose(src, (1, 0, 2))                 # (B, S, Fi) once, at edge
    pe = params["pe"][:S]                             # (S, D)

    args = (
        x, pe,
        params["emb_w"], params["emb_b"],
        params["in_proj_w"], params["in_proj_b"],
        params["out_proj_w"], params["out_proj_b"],
        params["ln1_g"], params["ln1_b"],
        params["w1"], params["b1"],
        params["w2"], params["b2"],
        params["ln2_g"], params["ln2_b"],
        params["dec_w_pad"], params["dec_b_pad"],
    )

    def full_spec(a):
        rank = a.ndim
        return pl.BlockSpec(a.shape, lambda i, _r=rank: (0,) * _r)

    in_specs = ([pl.BlockSpec((1, S, Fi), lambda i: (i, 0, 0))]
                + [full_spec(a) for a in args[1:]])

    out = pl.pallas_call(
        functools.partial(_fused_model_kernel, nhead=nhead,
                          num_layers=num_layers),
        out_shape=jax.ShapeDtypeStruct((B, S, Fp), jnp.float32),
        grid=(B,),
        in_specs=in_specs,
        out_specs=pl.BlockSpec((1, S, Fp), lambda i: (i, 0, 0)),
        scratch_shapes=[pltpu.VMEM((S, D), jnp.float32)],
        compiler_params=pltpu.CompilerParams(dimension_semantics=("parallel",)),
    )(*args)

    out = out[:, :, :Fi]                              # drop lane padding once
    return jnp.transpose(out, (1, 0, 2))              # back to (S, B, Fi)


# ------------------------------------------------------------ init params ---

def _uniform(key, shape, fan_in):
    bound = 1.0 / math.sqrt(fan_in)
    return jax.random.uniform(key, shape, jnp.float32, -bound, bound)


def init_params(key, input_dim, d_model, dim_feedforward, num_layers):
    keys = iter(jax.random.split(key, 4 + 8 * num_layers))
    fi_pad = max(128, ((input_dim + 127) // 128) * 128)

    emb_w = _uniform(next(keys), (input_dim, d_model), input_dim)
    emb_b = _uniform(next(keys), (1, d_model), input_dim)

    dec_w = _uniform(next(keys), (d_model, input_dim), d_model)
    dec_b = _uniform(next(keys), (1, input_dim), d_model)
    dec_w_pad = jnp.zeros((d_model, fi_pad), jnp.float32).at[:, :input_dim].set(dec_w)
    dec_b_pad = jnp.zeros((1, fi_pad), jnp.float32).at[:, :input_dim].set(dec_b)

    # per-layer params stacked along a leading num_layers axis; weights are
    # stored pre-transposed as (in_features, out_features)
    in_w, in_b, out_w, out_b, w1, b1, w2, b2 = ([] for _ in range(8))
    for _ in range(num_layers):
        in_w.append(_uniform(next(keys), (d_model, 3 * d_model), d_model))
        in_b.append(_uniform(next(keys), (1, 3 * d_model), d_model))
        out_w.append(_uniform(next(keys), (d_model, d_model), d_model))
        out_b.append(_uniform(next(keys), (1, d_model), d_model))
        w1.append(_uniform(next(keys), (d_model, dim_feedforward), d_model))
        b1.append(_uniform(next(keys), (1, dim_feedforward), d_model))
        w2.append(_uniform(next(keys), (dim_feedforward, d_model), dim_feedforward))
        b2.append(_uniform(next(keys), (1, d_model), dim_feedforward))

    return {
        "emb_w": emb_w, "emb_b": emb_b,
        "dec_w_pad": dec_w_pad, "dec_b_pad": dec_b_pad,
        "pe": positional_encoding_table(d_model),
        "in_proj_w": jnp.stack(in_w), "in_proj_b": jnp.stack(in_b),
        "out_proj_w": jnp.stack(out_w), "out_proj_b": jnp.stack(out_b),
        "w1": jnp.stack(w1), "b1": jnp.stack(b1),
        "w2": jnp.stack(w2), "b2": jnp.stack(b2),
        "ln1_g": jnp.ones((num_layers, 1, d_model), jnp.float32),
        "ln1_b": jnp.zeros((num_layers, 1, d_model), jnp.float32),
        "ln2_g": jnp.ones((num_layers, 1, d_model), jnp.float32),
        "ln2_b": jnp.zeros((num_layers, 1, d_model), jnp.float32),
    }


# ------------------------------------------------------------------- main ---

if __name__ == "__main__":
    # Small synthetic shapes consistent with the module's forward:
    # src: (seq, batch, input_dim) with input_dim = N_fine*N_fine*n_vars + 1
    # (scaled down: N_fine=5 -> input_dim=26). dim_feedforward scaled down
    # from the PyTorch default 2048 to 64 for the toy size.
    SEQ, BATCH = 8, 2
    INPUT_DIM = 5 * 5 * 1 + 1   # 26
    D_MODEL, NHEAD, NUM_LAYERS, DFF = 32, 4, 2, 64

    key = jax.random.PRNGKey(0)
    k_param, k_x = jax.random.split(key)
    params = init_params(k_param, INPUT_DIM, D_MODEL, DFF, NUM_LAYERS)
    src = jax.random.normal(k_x, (SEQ, BATCH, INPUT_DIM), jnp.float32)

    fwd = jax.jit(functools.partial(transformer_layer_forward,
                                    nhead=NHEAD, num_layers=NUM_LAYERS))
    out = fwd(src, params)
    jax.block_until_ready(out)
    assert out.shape == (SEQ, BATCH, INPUT_DIM)
    assert jnp.all(jnp.isfinite(out))
    print("KERNEL_OK")
</pallas_src>

<mosaic_0001>
module attributes {stable_mosaic.version = 11 : i64} {
  func.func @_fused_model_kernel(%arg0: i32, %arg1: memref<1x8x26xf32, #tpu.memory_space<vmem>>, %arg2: memref<8x32xf32, #tpu.memory_space<vmem>>, %arg3: memref<26x32xf32, #tpu.memory_space<vmem>>, %arg4: memref<1x32xf32, #tpu.memory_space<vmem>>, %arg5: memref<2x32x96xf32, #tpu.memory_space<vmem>>, %arg6: memref<2x1x96xf32, #tpu.memory_space<vmem>>, %arg7: memref<2x32x32xf32, #tpu.memory_space<vmem>>, %arg8: memref<2x1x32xf32, #tpu.memory_space<vmem>>, %arg9: memref<2x1x32xf32, #tpu.memory_space<vmem>>, %arg10: memref<2x1x32xf32, #tpu.memory_space<vmem>>, %arg11: memref<2x32x64xf32, #tpu.memory_space<vmem>>, %arg12: memref<2x1x64xf32, #tpu.memory_space<vmem>>, %arg13: memref<2x64x32xf32, #tpu.memory_space<vmem>>, %arg14: memref<2x1x32xf32, #tpu.memory_space<vmem>>, %arg15: memref<2x1x32xf32, #tpu.memory_space<vmem>>, %arg16: memref<2x1x32xf32, #tpu.memory_space<vmem>>, %arg17: memref<32x128xf32, #tpu.memory_space<vmem>>, %arg18: memref<1x128xf32, #tpu.memory_space<vmem>>, %arg19: memref<1x8x128xf32, #tpu.memory_space<vmem>>, %arg20: memref<8x32xf32, #tpu.memory_space<vmem>>) attributes {dimension_semantics = [#tpu.dimension_semantics<parallel>], iteration_bounds = array<i64: 2>, scalar_prefetch = 0 : i64, scratch_operands = 1 : i64, tpu.core_type = #tpu.core_type<tc>, window_params = [{transform_indices = @transform_0, window_bounds = array<i64: 1, 8, 26>}, {pipeline_mode = #tpu.pipeline_mode<synchronous>, transform_indices = @transform_1, window_bounds = array<i64: 8, 32>}, {pipeline_mode = #tpu.pipeline_mode<synchronous>, transform_indices = @transform_2, window_bounds = array<i64: 26, 32>}, {pipeline_mode = #tpu.pipeline_mode<synchronous>, transform_indices = @transform_3, window_bounds = array<i64: 1, 32>}, {pipeline_mode = #tpu.pipeline_mode<synchronous>, transform_indices = @transform_4, window_bounds = array<i64: 2, 32, 96>}, {pipeline_mode = #tpu.pipeline_mode<synchronous>, transform_indices = @transform_5, window_bounds = array<i64: 2, 1, 96>}, {pipeline_mode = #tpu.pipeline_mode<synchronous>, transform_indices = @transform_6, window_bounds = array<i64: 2, 32, 32>}, {pipeline_mode = #tpu.pipeline_mode<synchronous>, transform_indices = @transform_7, window_bounds = array<i64: 2, 1, 32>}, {pipeline_mode = #tpu.pipeline_mode<synchronous>, transform_indices = @transform_8, window_bounds = array<i64: 2, 1, 32>}, {pipeline_mode = #tpu.pipeline_mode<synchronous>, transform_indices = @transform_9, window_bounds = array<i64: 2, 1, 32>}, {pipeline_mode = #tpu.pipeline_mode<synchronous>, transform_indices = @transform_10, window_bounds = array<i64: 2, 32, 64>}, {pipeline_mode = #tpu.pipeline_mode<synchronous>, transform_indices = @transform_11, window_bounds = array<i64: 2, 1, 64>}, {pipeline_mode = #tpu.pipeline_mode<synchronous>, transform_indices = @transform_12, window_bounds = array<i64: 2, 64, 32>}, {pipeline_mode = #tpu.pipeline_mode<synchronous>, transform_indices = @transform_13, window_bounds = array<i64: 2, 1, 32>}, {pipeline_mode = #tpu.pipeline_mode<synchronous>, transform_indices = @transform_14, window_bounds = array<i64: 2, 1, 32>}, {pipeline_mode = #tpu.pipeline_mode<synchronous>, transform_indices = @transform_15, window_bounds = array<i64: 2, 1, 32>}, {pipeline_mode = #tpu.pipeline_mode<synchronous>, transform_indices = @transform_16, window_bounds = array<i64: 32, 128>}, {pipeline_mode = #tpu.pipeline_mode<synchronous>, transform_indices = @transform_17, window_bounds = array<i64: 1, 128>}, {transform_indices = @transform_18, window_bounds = array<i64: 1, 8, 128>}]} {
    %c0 = arith.constant 0 : index
    %c0_0 = arith.constant 0 : index
    %c0_1 = arith.constant 0 : index
    %0 = vector.load %arg1[%c0, %c0_0, %c0_1] : memref<1x8x26xf32, #tpu.memory_space<vmem>>, vector<1x8x26xf32>
    %1 = vector.shape_cast %0 : vector<1x8x26xf32> to vector<8x26xf32>
    %c0_2 = arith.constant 0 : index
    %c0_3 = arith.constant 0 : index
    %2 = vector.load %arg3[%c0_2, %c0_3] : memref<26x32xf32, #tpu.memory_space<vmem>>, vector<26x32xf32>
    %cst = arith.constant dense<0.000000e+00> : vector<8x32xf32>
    %3 = tpu.matmul %1, %2, %cst {dimension_numbers = #tpu.dot_dimension_numbers<[1], [0], [0], [1], [0, 0, 1, 1], [], []>} : vector<8x26xf32>, vector<26x32xf32>, vector<8x32xf32> -> vector<8x32xf32>
    %c0_4 = arith.constant 0 : index
    %c0_5 = arith.constant 0 : index
    %4 = vector.load %arg4[%c0_4, %c0_5] : memref<1x32xf32, #tpu.memory_space<vmem>>, vector<1x32xf32>
    %5 = vector.broadcast %4 : vector<1x32xf32> to vector<8x32xf32>
    %6 = arith.addf %3, %5 : vector<8x32xf32>
    %c0_6 = arith.constant 0 : index
    %c0_7 = arith.constant 0 : index
    %7 = vector.load %arg2[%c0_6, %c0_7] : memref<8x32xf32, #tpu.memory_space<vmem>>, vector<8x32xf32>
    %8 = arith.addf %6, %7 : vector<8x32xf32>
    %c0_8 = arith.constant 0 : index
    %c0_9 = arith.constant 0 : index
    %c0_10 = arith.constant 0 : index
    %9 = vector.load %arg5[%c0_8, %c0_9, %c0_10] : memref<2x32x96xf32, #tpu.memory_space<vmem>>, vector<1x32x96xf32>
    %10 = vector.shape_cast %9 : vector<1x32x96xf32> to vector<32x96xf32>
    %cst_11 = arith.constant dense<0.000000e+00> : vector<8x96xf32>
    %11 = tpu.matmul %8, %10, %cst_11 {dimension_numbers = #tpu.dot_dimension_numbers<[1], [0], [0], [1], [0, 0, 1, 1], [], []>} : vector<8x32xf32>, vector<32x96xf32>, vector<8x96xf32> -> vector<8x96xf32>
    %c0_12 = arith.constant 0 : index
    %c0_13 = arith.constant 0 : index
    %c0_14 = arith.constant 0 : index
    %12 = vector.load %arg6[%c0_12, %c0_13, %c0_14] : memref<2x1x96xf32, #tpu.memory_space<vmem>>, vector<1x1x96xf32>
    %13 = vector.shape_cast %12 : vector<1x1x96xf32> to vector<1x96xf32>
    %14 = vector.broadcast %13 : vector<1x96xf32> to vector<8x96xf32>
    %15 = arith.addf %11, %14 : vector<8x96xf32>
    %16 = vector.extract_strided_slice %15 {offsets = [0, 0], sizes = [8, 32], strides = [1, 1]} : vector<8x96xf32> to vector<8x32xf32>
    %cst_15 = arith.constant 0.353553385 : f32
    %17 = vector.broadcast %cst_15 : f32 to vector<8x32xf32>
    %18 = arith.mulf %16, %17 : vector<8x32xf32>
    %19 = vector.extract_strided_slice %15 {offsets = [0, 32], sizes = [8, 32], strides = [1, 1]} : vector<8x96xf32> to vector<8x32xf32>
    %20 = vector.extract_strided_slice %15 {offsets = [0, 64], sizes = [8, 32], strides = [1, 1]} : vector<8x96xf32> to vector<8x32xf32>
    %21 = vector.extract_strided_slice %18 {offsets = [0, 0], sizes = [8, 8], strides = [1, 1]} : vector<8x32xf32> to vector<8x8xf32>
    %22 = vector.extract_strided_slice %19 {offsets = [0, 0], sizes = [8, 8], strides = [1, 1]} : vector<8x32xf32> to vector<8x8xf32>
    %cst_16 = arith.constant dense<0.000000e+00> : vector<8x8xf32>
    %23 = tpu.matmul %21, %22, %cst_16 {dimension_numbers = #tpu.dot_dimension_numbers<[1], [1], [0], [0], [0, 0, 1, 0], [], []>} : vector<8x8xf32>, vector<8x8xf32>, vector<8x8xf32> -> vector<8x8xf32>
    %cst_17 = arith.constant dense<0xFF800000> : vector<8xf32>
    %24 = vector.multi_reduction <maximumf>, %23, %cst_17 [1] : vector<8x8xf32> to vector<8xf32>
    %25 = vector.shape_cast %24 : vector<8xf32> to vector<8x1xf32>
    %26 = vector.broadcast %25 : vector<8x1xf32> to vector<8x8xf32>
    %27 = arith.subf %23, %26 : vector<8x8xf32>
    %28 = math.exp %27 : vector<8x8xf32>
    %cst_18 = arith.constant dense<0.000000e+00> : vector<8xf32>
    %29 = vector.multi_reduction <add>, %28, %cst_18 [1] : vector<8x8xf32> to vector<8xf32>
    %30 = vector.shape_cast %29 : vector<8xf32> to vector<8x1xf32>
    %31 = tpu.reciprocal %30 : vector<8x1xf32> -> vector<8x1xf32>
    %32 = vector.broadcast %31 : vector<8x1xf32> to vector<8x8xf32>
    %33 = arith.mulf %28, %32 : vector<8x8xf32>
    %34 = vector.extract_strided_slice %20 {offsets = [0, 0], sizes = [8, 8], strides = [1, 1]} : vector<8x32xf32> to vector<8x8xf32>
    %cst_19 = arith.constant dense<0.000000e+00> : vector<8x8xf32>
    %35 = tpu.matmul %33, %34, %cst_19 {dimension_numbers = #tpu.dot_dimension_numbers<[1], [0], [0], [1], [0, 0, 1, 1], [], []>} : vector<8x8xf32>, vector<8x8xf32>, vector<8x8xf32> -> vector<8x8xf32>
    %c0_20 = arith.constant 0 : index
    %c0_21 = arith.constant 0 : index
    %36 = vector.load %arg20[%c0_20, %c0_21] : memref<8x32xf32, #tpu.memory_space<vmem>>, vector<8x8xf32>
    tpu.vector_store %arg20[%c0_20, %c0_21], %35 {strides = array<i32>} : memref<8x32xf32, #tpu.memory_space<vmem>>, vector<8x8xf32>,
    %37 = vector.extract_strided_slice %18 {offsets = [0, 8], sizes = [8, 8], strides = [1, 1]} : vector<8x32xf32> to vector<8x8xf32>
    %38 = vector.extract_strided_slice %19 {offsets = [0, 8], sizes = [8, 8], strides = [1, 1]} : vector<8x32xf32> to vector<8x8xf32>
    %cst_22 = arith.constant dense<0.000000e+00> : vector<8x8xf32>
    %39 = tpu.matmul %37, %38, %cst_22 {dimension_numbers = #tpu.dot_dimension_numbers<[1], [1], [0], [0], [0, 0, 1, 0], [], []>} : vector<8x8xf32>, vector<8x8xf32>, vector<8x8xf32> -> vector<8x8xf32>
    %cst_23 = arith.constant dense<0xFF800000> : vector<8xf32>
    %40 = vector.multi_reduction <maximumf>, %39, %cst_23 [1] : vector<8x8xf32> to vector<8xf32>
    %41 = vector.shape_cast %40 : vector<8xf32> to vector<8x1xf32>
    %42 = vector.broadcast %41 : vector<8x1xf32> to vector<8x8xf32>
    %43 = arith.subf %39, %42 : vector<8x8xf32>
    %44 = math.exp %43 : vector<8x8xf32>
    %cst_24 = arith.constant dense<0.000000e+00> : vector<8xf32>
    %45 = vector.multi_reduction <add>, %44, %cst_24 [1] : vector<8x8xf32> to vector<8xf32>
    %46 = vector.shape_cast %45 : vector<8xf32> to vector<8x1xf32>
    %47 = tpu.reciprocal %46 : vector<8x1xf32> -> vector<8x1xf32>
    %48 = vector.broadcast %47 : vector<8x1xf32> to vector<8x8xf32>
    %49 = arith.mulf %44, %48 : vector<8x8xf32>
    %50 = vector.extract_strided_slice %20 {offsets = [0, 8], sizes = [8, 8], strides = [1, 1]} : vector<8x32xf32> to vector<8x8xf32>
    %cst_25 = arith.constant dense<0.000000e+00> : vector<8x8xf32>
    %51 = tpu.matmul %49, %50, %cst_25 {dimension_numbers = #tpu.dot_dimension_numbers<[1], [0], [0], [1], [0, 0, 1, 1], [], []>} : vector<8x8xf32>, vector<8x8xf32>, vector<8x8xf32> -> vector<8x8xf32>
    %c0_26 = arith.constant 0 : index
    %c8 = arith.constant 8 : index
    %52 = vector.load %arg20[%c0_26, %c8] : memref<8x32xf32, #tpu.memory_space<vmem>>, vector<8x8xf32>
    tpu.vector_store %arg20[%c0_26, %c8], %51 {strides = array<i32>} : memref<8x32xf32, #tpu.memory_space<vmem>>, vector<8x8xf32>,
    %53 = vector.extract_strided_slice %18 {offsets = [0, 16], sizes = [8, 8], strides = [1, 1]} : vector<8x32xf32> to vector<8x8xf32>
    %54 = vector.extract_strided_slice %19 {offsets = [0, 16], sizes = [8, 8], strides = [1, 1]} : vector<8x32xf32> to vector<8x8xf32>
    %cst_27 = arith.constant dense<0.000000e+00> : vector<8x8xf32>
    %55 = tpu.matmul %53, %54, %cst_27 {dimension_numbers = #tpu.dot_dimension_numbers<[1], [1], [0], [0], [0, 0, 1, 0], [], []>} : vector<8x8xf32>, vector<8x8xf32>, vector<8x8xf32> -> vector<8x8xf32>
    %cst_28 = arith.constant dense<0xFF800000> : vector<8xf32>
    %56 = vector.multi_reduction <maximumf>, %55, %cst_28 [1] : vector<8x8xf32> to vector<8xf32>
    %57 = vector.shape_cast %56 : vector<8xf32> to vector<8x1xf32>
    %58 = vector.broadcast %57 : vector<8x1xf32> to vector<8x8xf32>
    %59 = arith.subf %55, %58 : vector<8x8xf32>
    %60 = math.exp %59 : vector<8x8xf32>
    %cst_29 = arith.constant dense<0.000000e+00> : vector<8xf32>
    %61 = vector.multi_reduction <add>, %60, %cst_29 [1] : vector<8x8xf32> to vector<8xf32>
    %62 = vector.shape_cast %61 : vector<8xf32> to vector<8x1xf32>
    %63 = tpu.reciprocal %62 : vector<8x1xf32> -> vector<8x1xf32>
    %64 = vector.broadcast %63 : vector<8x1xf32> to vector<8x8xf32>
    %65 = arith.mulf %60, %64 : vector<8x8xf32>
    %66 = vector.extract_strided_slice %20 {offsets = [0, 16], sizes = [8, 8], strides = [1, 1]} : vector<8x32xf32> to vector<8x8xf32>
    %cst_30 = arith.constant dense<0.000000e+00> : vector<8x8xf32>
    %67 = tpu.matmul %65, %66, %cst_30 {dimension_numbers = #tpu.dot_dimension_numbers<[1], [0], [0], [1], [0, 0, 1, 1], [], []>} : vector<8x8xf32>, vector<8x8xf32>, vector<8x8xf32> -> vector<8x8xf32>
    %c0_31 = arith.constant 0 : index
    %c16 = arith.constant 16 : index
    %68 = vector.load %arg20[%c0_31, %c16] : memref<8x32xf32, #tpu.memory_space<vmem>>, vector<8x8xf32>
    tpu.vector_store %arg20[%c0_31, %c16], %67 {strides = array<i32>} : memref<8x32xf32, #tpu.memory_space<vmem>>, vector<8x8xf32>,
    %69 = vector.extract_strided_slice %18 {offsets = [0, 24], sizes = [8, 8], strides = [1, 1]} : vector<8x32xf32> to vector<8x8xf32>
    %70 = vector.extract_strided_slice %19 {offsets = [0, 24], sizes = [8, 8], strides = [1, 1]} : vector<8x32xf32> to vector<8x8xf32>
    %cst_32 = arith.constant dense<0.000000e+00> : vector<8x8xf32>
    %71 = tpu.matmul %69, %70, %cst_32 {dimension_numbers = #tpu.dot_dimension_numbers<[1], [1], [0], [0], [0, 0, 1, 0], [], []>} : vector<8x8xf32>, vector<8x8xf32>, vector<8x8xf32> -> vector<8x8xf32>
    %cst_33 = arith.constant dense<0xFF800000> : vector<8xf32>
    %72 = vector.multi_reduction <maximumf>, %71, %cst_33 [1] : vector<8x8xf32> to vector<8xf32>
    %73 = vector.shape_cast %72 : vector<8xf32> to vector<8x1xf32>
    %74 = vector.broadcast %73 : vector<8x1xf32> to vector<8x8xf32>
    %75 = arith.subf %71, %74 : vector<8x8xf32>
    %76 = math.exp %75 : vector<8x8xf32>
    %cst_34 = arith.constant dense<0.000000e+00> : vector<8xf32>
    %77 = vector.multi_reduction <add>, %76, %cst_34 [1] : vector<8x8xf32> to vector<8xf32>
    %78 = vector.shape_cast %77 : vector<8xf32> to vector<8x1xf32>
    %79 = tpu.reciprocal %78 : vector<8x1xf32> -> vector<8x1xf32>
    %80 = vector.broadcast %79 : vector<8x1xf32> to vector<8x8xf32>
    %81 = arith.mulf %76, %80 : vector<8x8xf32>
    %82 = vector.extract_strided_slice %20 {offsets = [0, 24], sizes = [8, 8], strides = [1, 1]} : vector<8x32xf32> to vector<8x8xf32>
    %cst_35 = arith.constant dense<0.000000e+00> : vector<8x8xf32>
    %83 = tpu.matmul %81, %82, %cst_35 {dimension_numbers = #tpu.dot_dimension_numbers<[1], [0], [0], [1], [0, 0, 1, 1], [], []>} : vector<8x8xf32>, vector<8x8xf32>, vector<8x8xf32> -> vector<8x8xf32>
    %c0_36 = arith.constant 0 : index
    %c24 = arith.constant 24 : index
    %84 = vector.load %arg20[%c0_36, %c24] : memref<8x32xf32, #tpu.memory_space<vmem>>, vector<8x8xf32>
    tpu.vector_store %arg20[%c0_36, %c24], %83 {strides = array<i32>} : memref<8x32xf32, #tpu.memory_space<vmem>>, vector<8x8xf32>,
    %c0_37 = arith.constant 0 : index
    %c0_38 = arith.constant 0 : index
    %85 = vector.load %arg20[%c0_37, %c0_38] : memref<8x32xf32, #tpu.memory_space<vmem>>, vector<8x32xf32>
    %c0_39 = arith.constant 0 : index
    %c0_40 = arith.constant 0 : index
    %c0_41 = arith.constant 0 : index
    %86 = vector.load %arg7[%c0_39, %c0_40, %c0_41] : memref<2x32x32xf32, #tpu.memory_space<vmem>>, vector<1x32x32xf32>
    %87 = vector.shape_cast %86 : vector<1x32x32xf32> to vector<32x32xf32>
    %cst_42 = arith.constant dense<0.000000e+00> : vector<8x32xf32>
    %88 = tpu.matmul %85, %87, %cst_42 {dimension_numbers = #tpu.dot_dimension_numbers<[1], [0], [0], [1], [0, 0, 1, 1], [], []>} : vector<8x32xf32>, vector<32x32xf32>, vector<8x32xf32> -> vector<8x32xf32>
    %c0_43 = arith.constant 0 : index
    %c0_44 = arith.constant 0 : index
    %c0_45 = arith.constant 0 : index
    %89 = vector.load %arg8[%c0_43, %c0_44, %c0_45] : memref<2x1x32xf32, #tpu.memory_space<vmem>>, vector<1x1x32xf32>
    %90 = vector.shape_cast %89 : vector<1x1x32xf32> to vector<1x32xf32>
    %91 = vector.broadcast %90 : vector<1x32xf32> to vector<8x32xf32>
    %92 = arith.addf %88, %91 : vector<8x32xf32>
    %93 = arith.addf %8, %92 : vector<8x32xf32>
    %c0_46 = arith.constant 0 : index
    %c0_47 = arith.constant 0 : index
    %c0_48 = arith.constant 0 : index
    %94 = vector.load %arg9[%c0_46, %c0_47, %c0_48] : memref<2x1x32xf32, #tpu.memory_space<vmem>>, vector<1x1x32xf32>
    %95 = vector.shape_cast %94 : vector<1x1x32xf32> to vector<1x32xf32>
    %c0_49 = arith.constant 0 : index
    %c0_50 = arith.constant 0 : index
    %c0_51 = arith.constant 0 : index
    %96 = vector.load %arg10[%c0_49, %c0_50, %c0_51] : memref<2x1x32xf32, #tpu.memory_space<vmem>>, vector<1x1x32xf32>
    %97 = vector.shape_cast %96 : vector<1x1x32xf32> to vector<1x32xf32>
    %cst_52 = arith.constant dense<0.000000e+00> : vector<8xf32>
    %98 = vector.multi_reduction <add>, %93, %cst_52 [1] : vector<8x32xf32> to vector<8xf32>
    %99 = vector.shape_cast %98 : vector<8xf32> to vector<8x1xf32>
    %cst_53 = arith.constant 3.200000e+01 : f32
    %100 = vector.broadcast %cst_53 : f32 to vector<8x1xf32>
    %101 = arith.divf %99, %100 : vector<8x1xf32>
    %102 = vector.broadcast %101 : vector<8x1xf32> to vector<8x32xf32>
    %103 = arith.subf %93, %102 : vector<8x32xf32>
    %104 = arith.mulf %103, %103 : vector<8x32xf32>
    %cst_54 = arith.constant dense<0.000000e+00> : vector<8xf32>
    %105 = vector.multi_reduction <add>, %104, %cst_54 [1] : vector<8x32xf32> to vector<8xf32>
    %106 = vector.shape_cast %105 : vector<8xf32> to vector<8x1xf32>
    %cst_55 = arith.constant 3.200000e+01 : f32
    %107 = vector.broadcast %cst_55 : f32 to vector<8x1xf32>
    %108 = arith.divf %106, %107 : vector<8x1xf32>
    %109 = vector.broadcast %101 : vector<8x1xf32> to vector<8x32xf32>
    %110 = arith.subf %93, %109 : vector<8x32xf32>
    %cst_56 = arith.constant 9.99999974E-6 : f32
    %111 = vector.broadcast %cst_56 : f32 to vector<8x1xf32>
    %112 = arith.addf %108, %111 : vector<8x1xf32>
    %113 = math.rsqrt %112 : vector<8x1xf32>
    %114 = vector.broadcast %113 : vector<8x1xf32> to vector<8x32xf32>
    %115 = arith.mulf %110, %114 : vector<8x32xf32>
    %116 = vector.broadcast %95 : vector<1x32xf32> to vector<8x32xf32>
    %117 = arith.mulf %115, %116 : vector<8x32xf32>
    %118 = vector.broadcast %97 : vector<1x32xf32> to vector<8x32xf32>
    %119 = arith.addf %117, %118 : vector<8x32xf32>
    %c0_57 = arith.constant 0 : index
    %c0_58 = arith.constant 0 : index
    %c0_59 = arith.constant 0 : index
    %120 = vector.load %arg11[%c0_57, %c0_58, %c0_59] : memref<2x32x64xf32, #tpu.memory_space<vmem>>, vector<1x32x64xf32>
    %121 = vector.shape_cast %120 : vector<1x32x64xf32> to vector<32x64xf32>
    %cst_60 = arith.constant dense<0.000000e+00> : vector<8x64xf32>
    %122 = tpu.matmul %119, %121, %cst_60 {dimension_numbers = #tpu.dot_dimension_numbers<[1], [0], [0], [1], [0, 0, 1, 1], [], []>} : vector<8x32xf32>, vector<32x64xf32>, vector<8x64xf32> -> vector<8x64xf32>
    %c0_61 = arith.constant 0 : index
    %c0_62 = arith.constant 0 : index
    %c0_63 = arith.constant 0 : index
    %123 = vector.load %arg12[%c0_61, %c0_62, %c0_63] : memref<2x1x64xf32, #tpu.memory_space<vmem>>, vector<1x1x64xf32>
    %124 = vector.shape_cast %123 : vector<1x1x64xf32> to vector<1x64xf32>
    %125 = vector.broadcast %124 : vector<1x64xf32> to vector<8x64xf32>
    %126 = arith.addf %122, %125 : vector<8x64xf32>
    %cst_64 = arith.constant 0.000000e+00 : f32
    %127 = vector.broadcast %cst_64 : f32 to vector<8x64xf32>
    %128 = arith.maximumf %126, %127 : vector<8x64xf32>
    %c0_65 = arith.constant 0 : index
    %c0_66 = arith.constant 0 : index
    %c0_67 = arith.constant 0 : index
    %129 = vector.load %arg13[%c0_65, %c0_66, %c0_67] : memref<2x64x32xf32, #tpu.memory_space<vmem>>, vector<1x64x32xf32>
    %130 = vector.shape_cast %129 : vector<1x64x32xf32> to vector<64x32xf32>
    %cst_68 = arith.constant dense<0.000000e+00> : vector<8x32xf32>
    %131 = tpu.matmul %128, %130, %cst_68 {dimension_numbers = #tpu.dot_dimension_numbers<[1], [0], [0], [1], [0, 0, 1, 1], [], []>} : vector<8x64xf32>, vector<64x32xf32>, vector<8x32xf32> -> vector<8x32xf32>
    %c0_69 = arith.constant 0 : index
    %c0_70 = arith.constant 0 : index
    %c0_71 = arith.constant 0 : index
    %132 = vector.load %arg14[%c0_69, %c0_70, %c0_71] : memref<2x1x32xf32, #tpu.memory_space<vmem>>, vector<1x1x32xf32>
    %133 = vector.shape_cast %132 : vector<1x1x32xf32> to vector<1x32xf32>
    %134 = vector.broadcast %133 : vector<1x32xf32> to vector<8x32xf32>
    %135 = arith.addf %131, %134 : vector<8x32xf32>
    %136 = arith.addf %119, %135 : vector<8x32xf32>
    %c0_72 = arith.constant 0 : index
    %c0_73 = arith.constant 0 : index
    %c0_74 = arith.constant 0 : index
    %137 = vector.load %arg15[%c0_72, %c0_73, %c0_74] : memref<2x1x32xf32, #tpu.memory_space<vmem>>, vector<1x1x32xf32>
    %138 = vector.shape_cast %137 : vector<1x1x32xf32> to vector<1x32xf32>
    %c0_75 = arith.constant 0 : index
    %c0_76 = arith.constant 0 : index
    %c0_77 = arith.constant 0 : index
    %139 = vector.load %arg16[%c0_75, %c0_76, %c0_77] : memref<2x1x32xf32, #tpu.memory_space<vmem>>, vector<1x1x32xf32>
    %140 = vector.shape_cast %139 : vector<1x1x32xf32> to vector<1x32xf32>
    %cst_78 = arith.constant dense<0.000000e+00> : vector<8xf32>
    %141 = vector.multi_reduction <add>, %136, %cst_78 [1] : vector<8x32xf32> to vector<8xf32>
    %142 = vector.shape_cast %141 : vector<8xf32> to vector<8x1xf32>
    %cst_79 = arith.constant 3.200000e+01 : f32
    %143 = vector.broadcast %cst_79 : f32 to vector<8x1xf32>
    %144 = arith.divf %142, %143 : vector<8x1xf32>
    %145 = vector.broadcast %144 : vector<8x1xf32> to vector<8x32xf32>
    %146 = arith.subf %136, %145 : vector<8x32xf32>
    %147 = arith.mulf %146, %146 : vector<8x32xf32>
    %cst_80 = arith.constant dense<0.000000e+00> : vector<8xf32>
    %148 = vector.multi_reduction <add>, %147, %cst_80 [1] : vector<8x32xf32> to vector<8xf32>
    %149 = vector.shape_cast %148 : vector<8xf32> to vector<8x1xf32>
    %cst_81 = arith.constant 3.200000e+01 : f32
    %150 = vector.broadcast %cst_81 : f32 to vector<8x1xf32>
    %151 = arith.divf %149, %150 : vector<8x1xf32>
    %152 = vector.broadcast %144 : vector<8x1xf32> to vector<8x32xf32>
    %153 = arith.subf %136, %152 : vector<8x32xf32>
    %cst_82 = arith.constant 9.99999974E-6 : f32
    %154 = vector.broadcast %cst_82 : f32 to vector<8x1xf32>
    %155 = arith.addf %151, %154 : vector<8x1xf32>
    %156 = math.rsqrt %155 : vector<8x1xf32>
    %157 = vector.broadcast %156 : vector<8x1xf32> to vector<8x32xf32>
    %158 = arith.mulf %153, %157 : vector<8x32xf32>
    %159 = vector.broadcast %138 : vector<1x32xf32> to vector<8x32xf32>
    %160 = arith.mulf %158, %159 : vector<8x32xf32>
    %161 = vector.broadcast %140 : vector<1x32xf32> to vector<8x32xf32>
    %162 = arith.addf %160, %161 : vector<8x32xf32>
    %c1 = arith.constant 1 : index
    %c0_83 = arith.constant 0 : index
    %c0_84 = arith.constant 0 : index
    %163 = vector.load %arg5[%c1, %c0_83, %c0_84] : memref<2x32x96xf32, #tpu.memory_space<vmem>>, vector<1x32x96xf32>
    %164 = vector.shape_cast %163 : vector<1x32x96xf32> to vector<32x96xf32>
    %cst_85 = arith.constant dense<0.000000e+00> : vector<8x96xf32>
    %165 = tpu.matmul %162, %164, %cst_85 {dimension_numbers = #tpu.dot_dimension_numbers<[1], [0], [0], [1], [0, 0, 1, 1], [], []>} : vector<8x32xf32>, vector<32x96xf32>, vector<8x96xf32> -> vector<8x96xf32>
    %c1_86 = arith.constant 1 : index
    %c0_87 = arith.constant 0 : index
    %c0_88 = arith.constant 0 : index
    %166 = vector.load %arg6[%c1_86, %c0_87, %c0_88] : memref<2x1x96xf32, #tpu.memory_space<vmem>>, vector<1x1x96xf32>
    %167 = vector.shape_cast %166 : vector<1x1x96xf32> to vector<1x96xf32>
    %168 = vector.broadcast %167 : vector<1x96xf32> to vector<8x96xf32>
    %169 = arith.addf %165, %168 : vector<8x96xf32>
    %170 = vector.extract_strided_slice %169 {offsets = [0, 0], sizes = [8, 32], strides = [1, 1]} : vector<8x96xf32> to vector<8x32xf32>
    %cst_89 = arith.constant 0.353553385 : f32
    %171 = vector.broadcast %cst_89 : f32 to vector<8x32xf32>
    %172 = arith.mulf %170, %171 : vector<8x32xf32>
    %173 = vector.extract_strided_slice %169 {offsets = [0, 32], sizes = [8, 32], strides = [1, 1]} : vector<8x96xf32> to vector<8x32xf32>
    %174 = vector.extract_strided_slice %169 {offsets = [0, 64], sizes = [8, 32], strides = [1, 1]} : vector<8x96xf32> to vector<8x32xf32>
    %175 = vector.extract_strided_slice %172 {offsets = [0, 0], sizes = [8, 8], strides = [1, 1]} : vector<8x32xf32> to vector<8x8xf32>
    %176 = vector.extract_strided_slice %173 {offsets = [0, 0], sizes = [8, 8], strides = [1, 1]} : vector<8x32xf32> to vector<8x8xf32>
    %cst_90 = arith.constant dense<0.000000e+00> : vector<8x8xf32>
    %177 = tpu.matmul %175, %176, %cst_90 {dimension_numbers = #tpu.dot_dimension_numbers<[1], [1], [0], [0], [0, 0, 1, 0], [], []>} : vector<8x8xf32>, vector<8x8xf32>, vector<8x8xf32> -> vector<8x8xf32>
    %cst_91 = arith.constant dense<0xFF800000> : vector<8xf32>
    %178 = vector.multi_reduction <maximumf>, %177, %cst_91 [1] : vector<8x8xf32> to vector<8xf32>
    %179 = vector.shape_cast %178 : vector<8xf32> to vector<8x1xf32>
    %180 = vector.broadcast %179 : vector<8x1xf32> to vector<8x8xf32>
    %181 = arith.subf %177, %180 : vector<8x8xf32>
    %182 = math.exp %181 : vector<8x8xf32>
    %cst_92 = arith.constant dense<0.000000e+00> : vector<8xf32>
    %183 = vector.multi_reduction <add>, %182, %cst_92 [1] : vector<8x8xf32> to vector<8xf32>
    %184 = vector.shape_cast %183 : vector<8xf32> to vector<8x1xf32>
    %185 = tpu.reciprocal %184 : vector<8x1xf32> -> vector<8x1xf32>
    %186 = vector.broadcast %185 : vector<8x1xf32> to vector<8x8xf32>
    %187 = arith.mulf %182, %186 : vector<8x8xf32>
    %188 = vector.extract_strided_slice %174 {offsets = [0, 0], sizes = [8, 8], strides = [1, 1]} : vector<8x32xf32> to vector<8x8xf32>
    %cst_93 = arith.constant dense<0.000000e+00> : vector<8x8xf32>
    %189 = tpu.matmul %187, %188, %cst_93 {dimension_numbers = #tpu.dot_dimension_numbers<[1], [0], [0], [1], [0, 0, 1, 1], [], []>} : vector<8x8xf32>, vector<8x8xf32>, vector<8x8xf32> -> vector<8x8xf32>
    %c0_94 = arith.constant 0 : index
    %c0_95 = arith.constant 0 : index
    %190 = vector.load %arg20[%c0_94, %c0_95] : memref<8x32xf32, #tpu.memory_space<vmem>>, vector<8x8xf32>
    tpu.vector_store %arg20[%c0_94, %c0_95], %189 {strides = array<i32>} : memref<8x32xf32, #tpu.memory_space<vmem>>, vector<8x8xf32>,
    %191 = vector.extract_strided_slice %172 {offsets = [0, 8], sizes = [8, 8], strides = [1, 1]} : vector<8x32xf32> to vector<8x8xf32>
    %192 = vector.extract_strided_slice %173 {offsets = [0, 8], sizes = [8, 8], strides = [1, 1]} : vector<8x32xf32> to vector<8x8xf32>
    %cst_96 = arith.constant dense<0.000000e+00> : vector<8x8xf32>
    %193 = tpu.matmul %191, %192, %cst_96 {dimension_numbers = #tpu.dot_dimension_numbers<[1], [1], [0], [0], [0, 0, 1, 0], [], []>} : vector<8x8xf32>, vector<8x8xf32>, vector<8x8xf32> -> vector<8x8xf32>
    %cst_97 = arith.constant dense<0xFF800000> : vector<8xf32>
    %194 = vector.multi_reduction <maximumf>, %193, %cst_97 [1] : vector<8x8xf32> to vector<8xf32>
    %195 = vector.shape_cast %194 : vector<8xf32> to vector<8x1xf32>
    %196 = vector.broadcast %195 : vector<8x1xf32> to vector<8x8xf32>
    %197 = arith.subf %193, %196 : vector<8x8xf32>
    %198 = math.exp %197 : vector<8x8xf32>
    %cst_98 = arith.constant dense<0.000000e+00> : vector<8xf32>
    %199 = vector.multi_reduction <add>, %198, %cst_98 [1] : vector<8x8xf32> to vector<8xf32>
    %200 = vector.shape_cast %199 : vector<8xf32> to vector<8x1xf32>
    %201 = tpu.reciprocal %200 : vector<8x1xf32> -> vector<8x1xf32>
    %202 = vector.broadcast %201 : vector<8x1xf32> to vector<8x8xf32>
    %203 = arith.mulf %198, %202 : vector<8x8xf32>
    %204 = vector.extract_strided_slice %174 {offsets = [0, 8], sizes = [8, 8], strides = [1, 1]} : vector<8x32xf32> to vector<8x8xf32>
    %cst_99 = arith.constant dense<0.000000e+00> : vector<8x8xf32>
    %205 = tpu.matmul %203, %204, %cst_99 {dimension_numbers = #tpu.dot_dimension_numbers<[1], [0], [0], [1], [0, 0, 1, 1], [], []>} : vector<8x8xf32>, vector<8x8xf32>, vector<8x8xf32> -> vector<8x8xf32>
    %c0_100 = arith.constant 0 : index
    %c8_101 = arith.constant 8 : index
    %206 = vector.load %arg20[%c0_100, %c8_101] : memref<8x32xf32, #tpu.memory_space<vmem>>, vector<8x8xf32>
    tpu.vector_store %arg20[%c0_100, %c8_101], %205 {strides = array<i32>} : memref<8x32xf32, #tpu.memory_space<vmem>>, vector<8x8xf32>,
    %207 = vector.extract_strided_slice %172 {offsets = [0, 16], sizes = [8, 8], strides = [1, 1]} : vector<8x32xf32> to vector<8x8xf32>
    %208 = vector.extract_strided_slice %173 {offsets = [0, 16], sizes = [8, 8], strides = [1, 1]} : vector<8x32xf32> to vector<8x8xf32>
    %cst_102 = arith.constant dense<0.000000e+00> : vector<8x8xf32>
    %209 = tpu.matmul %207, %208, %cst_102 {dimension_numbers = #tpu.dot_dimension_numbers<[1], [1], [0], [0], [0, 0, 1, 0], [], []>} : vector<8x8xf32>, vector<8x8xf32>, vector<8x8xf32> -> vector<8x8xf32>
    %cst_103 = arith.constant dense<0xFF800000> : vector<8xf32>
    %210 = vector.multi_reduction <maximumf>, %209, %cst_103 [1] : vector<8x8xf32> to vector<8xf32>
    %211 = vector.shape_cast %210 : vector<8xf32> to vector<8x1xf32>
    %212 = vector.broadcast %211 : vector<8x1xf32> to vector<8x8xf32>
    %213 = arith.subf %209, %212 : vector<8x8xf32>
    %214 = math.exp %213 : vector<8x8xf32>
    %cst_104 = arith.constant dense<0.000000e+00> : vector<8xf32>
    %215 = vector.multi_reduction <add>, %214, %cst_104 [1] : vector<8x8xf32> to vector<8xf32>
    %216 = vector.shape_cast %215 : vector<8xf32> to vector<8x1xf32>
    %217 = tpu.reciprocal %216 : vector<8x1xf32> -> vector<8x1xf32>
    %218 = vector.broadcast %217 : vector<8x1xf32> to vector<8x8xf32>
    %219 = arith.mulf %214, %218 : vector<8x8xf32>
    %220 = vector.extract_strided_slice %174 {offsets = [0, 16], sizes = [8, 8], strides = [1, 1]} : vector<8x32xf32> to vector<8x8xf32>
    %cst_105 = arith.constant dense<0.000000e+00> : vector<8x8xf32>
    %221 = tpu.matmul %219, %220, %cst_105 {dimension_numbers = #tpu.dot_dimension_numbers<[1], [0], [0], [1], [0, 0, 1, 1], [], []>} : vector<8x8xf32>, vector<8x8xf32>, vector<8x8xf32> -> vector<8x8xf32>
    %c0_106 = arith.constant 0 : index
    %c16_107 = arith.constant 16 : index
    %222 = vector.load %arg20[%c0_106, %c16_107] : memref<8x32xf32, #tpu.memory_space<vmem>>, vector<8x8xf32>
    tpu.vector_store %arg20[%c0_106, %c16_107], %221 {strides = array<i32>} : memref<8x32xf32, #tpu.memory_space<vmem>>, vector<8x8xf32>,
    %223 = vector.extract_strided_slice %172 {offsets = [0, 24], sizes = [8, 8], strides = [1, 1]} : vector<8x32xf32> to vector<8x8xf32>
    %224 = vector.extract_strided_slice %173 {offsets = [0, 24], sizes = [8, 8], strides = [1, 1]} : vector<8x32xf32> to vector<8x8xf32>
    %cst_108 = arith.constant dense<0.000000e+00> : vector<8x8xf32>
    %225 = tpu.matmul %223, %224, %cst_108 {dimension_numbers = #tpu.dot_dimension_numbers<[1], [1], [0], [0], [0, 0, 1, 0], [], []>} : vector<8x8xf32>, vector<8x8xf32>, vector<8x8xf32> -> vector<8x8xf32>
    %cst_109 = arith.constant dense<0xFF800000> : vector<8xf32>
    %226 = vector.multi_reduction <maximumf>, %225, %cst_109 [1] : vector<8x8xf32> to vector<8xf32>
    %227 = vector.shape_cast %226 : vector<8xf32> to vector<8x1xf32>
    %228 = vector.broadcast %227 : vector<8x1xf32> to vector<8x8xf32>
    %229 = arith.subf %225, %228 : vector<8x8xf32>
    %230 = math.exp %229 : vector<8x8xf32>
    %cst_110 = arith.constant dense<0.000000e+00> : vector<8xf32>
    %231 = vector.multi_reduction <add>, %230, %cst_110 [1] : vector<8x8xf32> to vector<8xf32>
    %232 = vector.shape_cast %231 : vector<8xf32> to vector<8x1xf32>
    %233 = tpu.reciprocal %232 : vector<8x1xf32> -> vector<8x1xf32>
    %234 = vector.broadcast %233 : vector<8x1xf32> to vector<8x8xf32>
    %235 = arith.mulf %230, %234 : vector<8x8xf32>
    %236 = vector.extract_strided_slice %174 {offsets = [0, 24], sizes = [8, 8], strides = [1, 1]} : vector<8x32xf32> to vector<8x8xf32>
    %cst_111 = arith.constant dense<0.000000e+00> : vector<8x8xf32>
    %237 = tpu.matmul %235, %236, %cst_111 {dimension_numbers = #tpu.dot_dimension_numbers<[1], [0], [0], [1], [0, 0, 1, 1], [], []>} : vector<8x8xf32>, vector<8x8xf32>, vector<8x8xf32> -> vector<8x8xf32>
    %c0_112 = arith.constant 0 : index
    %c24_113 = arith.constant 24 : index
    %238 = vector.load %arg20[%c0_112, %c24_113] : memref<8x32xf32, #tpu.memory_space<vmem>>, vector<8x8xf32>
    tpu.vector_store %arg20[%c0_112, %c24_113], %237 {strides = array<i32>} : memref<8x32xf32, #tpu.memory_space<vmem>>, vector<8x8xf32>,
    %c0_114 = arith.constant 0 : index
    %c0_115 = arith.constant 0 : index
    %239 = vector.load %arg20[%c0_114, %c0_115] : memref<8x32xf32, #tpu.memory_space<vmem>>, vector<8x32xf32>
    %c1_116 = arith.constant 1 : index
    %c0_117 = arith.constant 0 : index
    %c0_118 = arith.constant 0 : index
    %240 = vector.load %arg7[%c1_116, %c0_117, %c0_118] : memref<2x32x32xf32, #tpu.memory_space<vmem>>, vector<1x32x32xf32>
    %241 = vector.shape_cast %240 : vector<1x32x32xf32> to vector<32x32xf32>
    %cst_119 = arith.constant dense<0.000000e+00> : vector<8x32xf32>
    %242 = tpu.matmul %239, %241, %cst_119 {dimension_numbers = #tpu.dot_dimension_numbers<[1], [0], [0], [1], [0, 0, 1, 1], [], []>} : vector<8x32xf32>, vector<32x32xf32>, vector<8x32xf32> -> vector<8x32xf32>
    %c1_120 = arith.constant 1 : index
    %c0_121 = arith.constant 0 : index
    %c0_122 = arith.constant 0 : index
    %243 = vector.load %arg8[%c1_120, %c0_121, %c0_122] : memref<2x1x32xf32, #tpu.memory_space<vmem>>, vector<1x1x32xf32>
    %244 = vector.shape_cast %243 : vector<1x1x32xf32> to vector<1x32xf32>
    %245 = vector.broadcast %244 : vector<1x32xf32> to vector<8x32xf32>
    %246 = arith.addf %242, %245 : vector<8x32xf32>
    %247 = arith.addf %162, %246 : vector<8x32xf32>
    %c1_123 = arith.constant 1 : index
    %c0_124 = arith.constant 0 : index
    %c0_125 = arith.constant 0 : index
    %248 = vector.load %arg9[%c1_123, %c0_124, %c0_125] : memref<2x1x32xf32, #tpu.memory_space<vmem>>, vector<1x1x32xf32>
    %249 = vector.shape_cast %248 : vector<1x1x32xf32> to vector<1x32xf32>
    %c1_126 = arith.constant 1 : index
    %c0_127 = arith.constant 0 : index
    %c0_128 = arith.constant 0 : index
    %250 = vector.load %arg10[%c1_126, %c0_127, %c0_128] : memref<2x1x32xf32, #tpu.memory_space<vmem>>, vector<1x1x32xf32>
    %251 = vector.shape_cast %250 : vector<1x1x32xf32> to vector<1x32xf32>
    %cst_129 = arith.constant dense<0.000000e+00> : vector<8xf32>
    %252 = vector.multi_reduction <add>, %247, %cst_129 [1] : vector<8x32xf32> to vector<8xf32>
    %253 = vector.shape_cast %252 : vector<8xf32> to vector<8x1xf32>
    %cst_130 = arith.constant 3.200000e+01 : f32
    %254 = vector.broadcast %cst_130 : f32 to vector<8x1xf32>
    %255 = arith.divf %253, %254 : vector<8x1xf32>
    %256 = vector.broadcast %255 : vector<8x1xf32> to vector<8x32xf32>
    %257 = arith.subf %247, %256 : vector<8x32xf32>
    %258 = arith.mulf %257, %257 : vector<8x32xf32>
    %cst_131 = arith.constant dense<0.000000e+00> : vector<8xf32>
    %259 = vector.multi_reduction <add>, %258, %cst_131 [1] : vector<8x32xf32> to vector<8xf32>
    %260 = vector.shape_cast %259 : vector<8xf32> to vector<8x1xf32>
    %cst_132 = arith.constant 3.200000e+01 : f32
    %261 = vector.broadcast %cst_132 : f32 to vector<8x1xf32>
    %262 = arith.divf %260, %261 : vector<8x1xf32>
    %263 = vector.broadcast %255 : vector<8x1xf32> to vector<8x32xf32>
    %264 = arith.subf %247, %263 : vector<8x32xf32>
    %cst_133 = arith.constant 9.99999974E-6 : f32
    %265 = vector.broadcast %cst_133 : f32 to vector<8x1xf32>
    %266 = arith.addf %262, %265 : vector<8x1xf32>
    %267 = math.rsqrt %266 : vector<8x1xf32>
    %268 = vector.broadcast %267 : vector<8x1xf32> to vector<8x32xf32>
    %269 = arith.mulf %264, %268 : vector<8x32xf32>
    %270 = vector.broadcast %249 : vector<1x32xf32> to vector<8x32xf32>
    %271 = arith.mulf %269, %270 : vector<8x32xf32>
    %272 = vector.broadcast %251 : vector<1x32xf32> to vector<8x32xf32>
    %273 = arith.addf %271, %272 : vector<8x32xf32>
    %c1_134 = arith.constant 1 : index
    %c0_135 = arith.constant 0 : index
    %c0_136 = arith.constant 0 : index
    %274 = vector.load %arg11[%c1_134, %c0_135, %c0_136] : memref<2x32x64xf32, #tpu.memory_space<vmem>>, vector<1x32x64xf32>
    %275 = vector.shape_cast %274 : vector<1x32x64xf32> to vector<32x64xf32>
    %cst_137 = arith.constant dense<0.000000e+00> : vector<8x64xf32>
    %276 = tpu.matmul %273, %275, %cst_137 {dimension_numbers = #tpu.dot_dimension_numbers<[1], [0], [0], [1], [0, 0, 1, 1], [], []>} : vector<8x32xf32>, vector<32x64xf32>, vector<8x64xf32> -> vector<8x64xf32>
    %c1_138 = arith.constant 1 : index
    %c0_139 = arith.constant 0 : index
    %c0_140 = arith.constant 0 : index
    %277 = vector.load %arg12[%c1_138, %c0_139, %c0_140] : memref<2x1x64xf32, #tpu.memory_space<vmem>>, vector<1x1x64xf32>
    %278 = vector.shape_cast %277 : vector<1x1x64xf32> to vector<1x64xf32>
    %279 = vector.broadcast %278 : vector<1x64xf32> to vector<8x64xf32>
    %280 = arith.addf %276, %279 : vector<8x64xf32>
    %cst_141 = arith.constant 0.000000e+00 : f32
    %281 = vector.broadcast %cst_141 : f32 to vector<8x64xf32>
    %282 = arith.maximumf %280, %281 : vector<8x64xf32>
    %c1_142 = arith.constant 1 : index
    %c0_143 = arith.constant 0 : index
    %c0_144 = arith.constant 0 : index
    %283 = vector.load %arg13[%c1_142, %c0_143, %c0_144] : memref<2x64x32xf32, #tpu.memory_space<vmem>>, vector<1x64x32xf32>
    %284 = vector.shape_cast %283 : vector<1x64x32xf32> to vector<64x32xf32>
    %cst_145 = arith.constant dense<0.000000e+00> : vector<8x32xf32>
    %285 = tpu.matmul %282, %284, %cst_145 {dimension_numbers = #tpu.dot_dimension_numbers<[1], [0], [0], [1], [0, 0, 1, 1], [], []>} : vector<8x64xf32>, vector<64x32xf32>, vector<8x32xf32> -> vector<8x32xf32>
    %c1_146 = arith.constant 1 : index
    %c0_147 = arith.constant 0 : index
    %c0_148 = arith.constant 0 : index
    %286 = vector.load %arg14[%c1_146, %c0_147, %c0_148] : memref<2x1x32xf32, #tpu.memory_space<vmem>>, vector<1x1x32xf32>
    %287 = vector.shape_cast %286 : vector<1x1x32xf32> to vector<1x32xf32>
    %288 = vector.broadcast %287 : vector<1x32xf32> to vector<8x32xf32>
    %289 = arith.addf %285, %288 : vector<8x32xf32>
    %290 = arith.addf %273, %289 : vector<8x32xf32>
    %c1_149 = arith.constant 1 : index
    %c0_150 = arith.constant 0 : index
    %c0_151 = arith.constant 0 : index
    %291 = vector.load %arg15[%c1_149, %c0_150, %c0_151] : memref<2x1x32xf32, #tpu.memory_space<vmem>>, vector<1x1x32xf32>
    %292 = vector.shape_cast %291 : vector<1x1x32xf32> to vector<1x32xf32>
    %c1_152 = arith.constant 1 : index
    %c0_153 = arith.constant 0 : index
    %c0_154 = arith.constant 0 : index
    %293 = vector.load %arg16[%c1_152, %c0_153, %c0_154] : memref<2x1x32xf32, #tpu.memory_space<vmem>>, vector<1x1x32xf32>
    %294 = vector.shape_cast %293 : vector<1x1x32xf32> to vector<1x32xf32>
    %cst_155 = arith.constant dense<0.000000e+00> : vector<8xf32>
    %295 = vector.multi_reduction <add>, %290, %cst_155 [1] : vector<8x32xf32> to vector<8xf32>
    %296 = vector.shape_cast %295 : vector<8xf32> to vector<8x1xf32>
    %cst_156 = arith.constant 3.200000e+01 : f32
    %297 = vector.broadcast %cst_156 : f32 to vector<8x1xf32>
    %298 = arith.divf %296, %297 : vector<8x1xf32>
    %299 = vector.broadcast %298 : vector<8x1xf32> to vector<8x32xf32>
    %300 = arith.subf %290, %299 : vector<8x32xf32>
    %301 = arith.mulf %300, %300 : vector<8x32xf32>
    %cst_157 = arith.constant dense<0.000000e+00> : vector<8xf32>
    %302 = vector.multi_reduction <add>, %301, %cst_157 [1] : vector<8x32xf32> to vector<8xf32>
    %303 = vector.shape_cast %302 : vector<8xf32> to vector<8x1xf32>
    %cst_158 = arith.constant 3.200000e+01 : f32
    %304 = vector.broadcast %cst_158 : f32 to vector<8x1xf32>
    %305 = arith.divf %303, %304 : vector<8x1xf32>
    %306 = vector.broadcast %298 : vector<8x1xf32> to vector<8x32xf32>
    %307 = arith.subf %290, %306 : vector<8x32xf32>
    %cst_159 = arith.constant 9.99999974E-6 : f32
    %308 = vector.broadcast %cst_159 : f32 to vector<8x1xf32>
    %309 = arith.addf %305, %308 : vector<8x1xf32>
    %310 = math.rsqrt %309 : vector<8x1xf32>
    %311 = vector.broadcast %310 : vector<8x1xf32> to vector<8x32xf32>
    %312 = arith.mulf %307, %311 : vector<8x32xf32>
    %313 = vector.broadcast %292 : vector<1x32xf32> to vector<8x32xf32>
    %314 = arith.mulf %312, %313 : vector<8x32xf32>
    %315 = vector.broadcast %294 : vector<1x32xf32> to vector<8x32xf32>
    %316 = arith.addf %314, %315 : vector<8x32xf32>
    %c0_160 = arith.constant 0 : index
    %c0_161 = arith.constant 0 : index
    %317 = vector.load %arg17[%c0_160, %c0_161] : memref<32x128xf32, #tpu.memory_space<vmem>>, vector<32x128xf32>
    %cst_162 = arith.constant dense<0.000000e+00> : vector<8x128xf32>
    %318 = tpu.matmul %316, %317, %cst_162 {dimension_numbers = #tpu.dot_dimension_numbers<[1], [0], [0], [1], [0, 0, 1, 1], [], []>} : vector<8x32xf32>, vector<32x128xf32>, vector<8x128xf32> -> vector<8x128xf32>
    %c0_163 = arith.constant 0 : index
    %c0_164 = arith.constant 0 : index
    %319 = vector.load %arg18[%c0_163, %c0_164] : memref<1x128xf32, #tpu.memory_space<vmem>>, vector<1x128xf32>
    %320 = vector.broadcast %319 : vector<1x128xf32> to vector<8x128xf32>
    %321 = arith.addf %318, %320 : vector<8x128xf32>
    %c0_165 = arith.constant 0 : index
    %c0_166 = arith.constant 0 : index
    %c0_167 = arith.constant 0 : index
    %322 = vector.load %arg19[%c0_165, %c0_166, %c0_167] : memref<1x8x128xf32, #tpu.memory_space<vmem>>, vector<1x8x128xf32>
    %323 = vector.shape_cast %322 : vector<1x8x128xf32> to vector<8x128xf32>
    %324 = vector.shape_cast %321 : vector<8x128xf32> to vector<1x8x128xf32>
    tpu.vector_store %arg19[%c0_165, %c0_166, %c0_167], %324 {strides = array<i32>} : memref<1x8x128xf32, #tpu.memory_space<vmem>>, vector<1x8x128xf32>,
    return
  }
  func.func @transform_0(%arg0: i32) -> (i32, i32, i32) {
    %c0_i32 = arith.constant 0 : i32
    %c0_i32_0 = arith.constant 0 : i32
    %c0_i32_1 = arith.constant 0 : i32
    return %arg0, %c0_i32, %c0_i32_0 : i32, i32, i32
  }
  func.func @transform_1(%arg0: i32) -> (i32, i32) {
    %c0_i32 = arith.constant 0 : i32
    %c0_i32_0 = arith.constant 0 : i32
    %c0_i32_1 = arith.constant 0 : i32
    return %c0_i32, %c0_i32_0 : i32, i32
  }
  func.func @transform_2(%arg0: i32) -> (i32, i32) {
    %c0_i32 = arith.constant 0 : i32
    %c0_i32_0 = arith.constant 0 : i32
    %c0_i32_1 = arith.constant 0 : i32
    return %c0_i32, %c0_i32_0 : i32, i32
  }
  func.func @transform_3(%arg0: i32) -> (i32, i32) {
    %c0_i32 = arith.constant 0 : i32
    %c0_i32_0 = arith.constant 0 : i32
    %c0_i32_1 = arith.constant 0 : i32
    return %c0_i32, %c0_i32_0 : i32, i32
  }
  func.func @transform_4(%arg0: i32) -> (i32, i32, i32) {
    %c0_i32 = arith.constant 0 : i32
    %c0_i32_0 = arith.constant 0 : i32
    %c0_i32_1 = arith.constant 0 : i32
    %c0_i32_2 = arith.constant 0 : i32
    return %c0_i32, %c0_i32_0, %c0_i32_1 : i32, i32, i32
  }
  func.func @transform_5(%arg0: i32) -> (i32, i32, i32) {
    %c0_i32 = arith.constant 0 : i32
    %c0_i32_0 = arith.constant 0 : i32
    %c0_i32_1 = arith.constant 0 : i32
    %c0_i32_2 = arith.constant 0 : i32
    return %c0_i32, %c0_i32_0, %c0_i32_1 : i32, i32, i32
  }
  func.func @transform_6(%arg0: i32) -> (i32, i32, i32) {
    %c0_i32 = arith.constant 0 : i32
    %c0_i32_0 = arith.constant 0 : i32
    %c0_i32_1 = arith.constant 0 : i32
    %c0_i32_2 = arith.constant 0 : i32
    return %c0_i32, %c0_i32_0, %c0_i32_1 : i32, i32, i32
  }
  func.func @transform_7(%arg0: i32) -> (i32, i32, i32) {
    %c0_i32 = arith.constant 0 : i32
    %c0_i32_0 = arith.constant 0 : i32
    %c0_i32_1 = arith.constant 0 : i32
    %c0_i32_2 = arith.constant 0 : i32
    return %c0_i32, %c0_i32_0, %c0_i32_1 : i32, i32, i32
  }
  func.func @transform_8(%arg0: i32) -> (i32, i32, i32) {
    %c0_i32 = arith.constant 0 : i32
    %c0_i32_0 = arith.constant 0 : i32
    %c0_i32_1 = arith.constant 0 : i32
    %c0_i32_2 = arith.constant 0 : i32
    return %c0_i32, %c0_i32_0, %c0_i32_1 : i32, i32, i32
  }
  func.func @transform_9(%arg0: i32) -> (i32, i32, i32) {
    %c0_i32 = arith.constant 0 : i32
    %c0_i32_0 = arith.constant 0 : i32
    %c0_i32_1 = arith.constant 0 : i32
    %c0_i32_2 = arith.constant 0 : i32
    return %c0_i32, %c0_i32_0, %c0_i32_1 : i32, i32, i32
  }
  func.func @transform_10(%arg0: i32) -> (i32, i32, i32) {
    %c0_i32 = arith.constant 0 : i32
    %c0_i32_0 = arith.constant 0 : i32
    %c0_i32_1 = arith.constant 0 : i32
    %c0_i32_2 = arith.constant 0 : i32
    return %c0_i32, %c0_i32_0, %c0_i32_1 : i32, i32, i32
  }
  func.func @transform_11(%arg0: i32) -> (i32, i32, i32) {
    %c0_i32 = arith.constant 0 : i32
    %c0_i32_0 = arith.constant 0 : i32
    %c0_i32_1 = arith.constant 0 : i32
    %c0_i32_2 = arith.constant 0 : i32
    return %c0_i32, %c0_i32_0, %c0_i32_1 : i32, i32, i32
  }
  func.func @transform_12(%arg0: i32) -> (i32, i32, i32) {
    %c0_i32 = arith.constant 0 : i32
    %c0_i32_0 = arith.constant 0 : i32
    %c0_i32_1 = arith.constant 0 : i32
    %c0_i32_2 = arith.constant 0 : i32
    return %c0_i32, %c0_i32_0, %c0_i32_1 : i32, i32, i32
  }
  func.func @transform_13(%arg0: i32) -> (i32, i32, i32) {
    %c0_i32 = arith.constant 0 : i32
    %c0_i32_0 = arith.constant 0 : i32
    %c0_i32_1 = arith.constant 0 : i32
    %c0_i32_2 = arith.constant 0 : i32
    return %c0_i32, %c0_i32_0, %c0_i32_1 : i32, i32, i32
  }
  func.func @transform_14(%arg0: i32) -> (i32, i32, i32) {
    %c0_i32 = arith.constant 0 : i32
    %c0_i32_0 = arith.constant 0 : i32
    %c0_i32_1 = arith.constant 0 : i32
    %c0_i32_2 = arith.constant 0 : i32
    return %c0_i32, %c0_i32_0, %c0_i32_1 : i32, i32, i32
  }
  func.func @transform_15(%arg0: i32) -> (i32, i32, i32) {
    %c0_i32 = arith.constant 0 : i32
    %c0_i32_0 = arith.constant 0 : i32
    %c0_i32_1 = arith.constant 0 : i32
    %c0_i32_2 = arith.constant 0 : i32
    return %c0_i32, %c0_i32_0, %c0_i32_1 : i32, i32, i32
  }
  func.func @transform_16(%arg0: i32) -> (i32, i32) {
    %c0_i32 = arith.constant 0 : i32
    %c0_i32_0 = arith.constant 0 : i32
    %c0_i32_1 = arith.constant 0 : i32
    return %c0_i32, %c0_i32_0 : i32, i32
  }
  func.func @transform_17(%arg0: i32) -> (i32, i32) {
    %c0_i32 = arith.constant 0 : i32
    %c0_i32_0 = arith.constant 0 : i32
    %c0_i32_1 = arith.constant 0 : i32
    return %c0_i32, %c0_i32_0 : i32, i32
  }
  func.func @transform_18(%arg0: i32) -> (i32, i32, i32) {
    %c0_i32 = arith.constant 0 : i32
    %c0_i32_0 = arith.constant 0 : i32
    %c0_i32_1 = arith.constant 0 : i32
    return %arg0, %c0_i32, %c0_i32_0 : i32, i32, i32
  }
}

</mosaic_0001>

<llo_original>
// kernel: transformer_layer_forward.1
$region0: #{transformer_layer_forward.1}
  #allocation0 [shape = 'u32[]', space=smem, size = 0x4, offset = 0x4, fixed_abs, tag = 'smem constant byte address 0x4 - core index']
  #allocation1 [shape = 'u32[72,128]{1,0:T(1,128)}', space=vmem, size = 0x9000, scoped, tag = 'internal scratch']
  #allocation2 [shape = 'f32[8,32]{1,0:T(8,128)}', space=vmem, size = 0x1000, scoped, tag = 'scratch operand']
  %s0 = inlined_call_operand.vmem [shape: f32[2,8,26], index: 0, kind: input, shape index: {}]
  %s1 = inlined_call_operand.vmem [shape: f32[8,32], index: 1, kind: input, shape index: {}]
  %s2 = inlined_call_operand.hbm [shape: f32[26,32], index: 2, kind: input, shape index: {}]
  %s3 = inlined_call_operand.vmem [shape: f32[1,32], index: 3, kind: input, shape index: {}]
  %s4 = inlined_call_operand.vmem [shape: f32[2,32,96], index: 4, kind: input, shape index: {}]
  %s5 = inlined_call_operand.vmem [shape: f32[2,1,96], index: 5, kind: input, shape index: {}]
  %s6 = inlined_call_operand.vmem [shape: f32[2,32,32], index: 6, kind: input, shape index: {}]
  %s7 = inlined_call_operand.vmem [shape: f32[2,1,32], index: 7, kind: input, shape index: {}]
  %s8 = inlined_call_operand.vmem [shape: f32[2,1,32], index: 8, kind: input, shape index: {}]
  %s9 = inlined_call_operand.vmem [shape: f32[2,1,32], index: 9, kind: input, shape index: {}]
  %s10 = inlined_call_operand.vmem [shape: f32[2,32,64], index: 10, kind: input, shape index: {}]
  %s11 = inlined_call_operand.vmem [shape: f32[2,1,64], index: 11, kind: input, shape index: {}]
  %s12 = inlined_call_operand.vmem [shape: f32[2,64,32], index: 12, kind: input, shape index: {}]
  %s13 = inlined_call_operand.vmem [shape: f32[2,1,32], index: 13, kind: input, shape index: {}]
  %s14 = inlined_call_operand.vmem [shape: f32[2,1,32], index: 14, kind: input, shape index: {}]
  %s15 = inlined_call_operand.vmem [shape: f32[2,1,32], index: 15, kind: input, shape index: {}]
  %s16 = inlined_call_operand.hbm [shape: f32[32,128], index: 16, kind: input, shape index: {}]
  %s17 = inlined_call_operand.vmem [shape: f32[1,128], index: 17, kind: input, shape index: {}]
  %s18 = inlined_call_operand.vmem [shape: f32[2,8,128], index: 18, kind: output, shape index: {}]
  %s19 = sld [smem:[#allocation0]]
  $region113: #{transformer_layer_forward.1} parent=0
    _
  %s21 = ssub.s32 1, %s19
  %s22 = scalar_select 0, %s21, %s19
  $region1: #{transformer_layer_forward.1} parent=0
    #allocation3 [shape = 'u8[16384]{0}', space=vmem, size = 0x4000, scoped, tag = 'input window, operand 2, single buffered']
    #allocation4 [shape = 's32[2]{0}', space=sflag, size = 0x8, scoped, tag = 'scoped memory for transformer_layer_forward.1']
    #allocation5 [shape = 'u8[16384]{0}', space=vmem, size = 0x4000, scoped, tag = 'input window, operand 16, single buffered']
    #allocation6 [shape = 's32[1]{0}', space=sflag, size = 0x4, scoped, tag = 'scoped memory for transformer_layer_forward.1']
    %23 = vsyncpa [#allocation4], 0
    %24 = vsyncpa [#allocation6], 0
    loop: start=0, step=1, limit=4
    $region2: #{transformer_layer_forward.1} parent=1 // loop_pre_header
      _
    $region3: #{transformer_layer_forward.1} parent=1 // loop_header
      %s26 = sphi 0, %s30
      %p27 = scmp.ge.s32.totalorder %s26, 4
      %s36 = sphi 0, %s38
      %s39 = sphi 0, %s36
      %s40 = sphi 0, %s39
      %s56 = sphi 0, %s40
      %s60 = sphi 0, %s60
      %s62 = sphi 0, %s60
      %s63 = sphi 0, %s62
      %s77 = sphi 0, %s63
      %s81 = sphi 0, %s81
      %s83 = sphi 0, %s81
      %s84 = sphi 0, %s83
      %s98 = sphi 0, %s84
      %s102 = sphi 0, %s102
      %s104 = sphi 0, %s102
      %s105 = sphi 0, %s104
      %s119 = sphi 0, %s105
      %s123 = sphi 0, %s123
      %s125 = sphi 0, %s123
      %s126 = sphi 0, %s125
      %s140 = sphi 0, %s126
      %s144 = sphi 0, %s144
      %s146 = sphi 0, %s144
      %s147 = sphi 0, %s146
      %s161 = sphi 0, %s147
      %s165 = sphi 0, %s165
      %s167 = sphi 0, %s165
      %s168 = sphi 0, %s167
      %s182 = sphi 0, %s168
      %s186 = sphi 0, %s186
      %s188 = sphi 0, %s186
      %s189 = sphi 0, %s188
      %s203 = sphi 0, %s189
      %s207 = sphi 0, %s207
      %s209 = sphi 0, %s207
      %s210 = sphi 0, %s209
      %s224 = sphi 0, %s210
      %s228 = sphi 0, %s228
      %s230 = sphi 0, %s228
      %s231 = sphi 0, %s230
      %s245 = sphi 0, %s231
      %s249 = sphi 0, %s249
      %s251 = sphi 0, %s249
      %s252 = sphi 0, %s251
      %s266 = sphi 0, %s252
      %s270 = sphi 0, %s270
      %s272 = sphi 0, %s270
      %s273 = sphi 0, %s272
      %s287 = sphi 0, %s273
      %s291 = sphi 0, %s291
      %s293 = sphi 0, %s291
      %s294 = sphi 0, %s293
      %s308 = sphi 0, %s294
      %s312 = sphi 0, %s312
      %s314 = sphi 0, %s312
      %s315 = sphi 0, %s314
      %s329 = sphi 0, %s315
      %s333 = sphi 0, %s333
      %s335 = sphi 0, %s333
      %s336 = sphi 0, %s335
      %s350 = sphi 0, %s336
      %s354 = sphi 0, %s354
      %s356 = sphi 0, %s354
      %s357 = sphi 0, %s356
      %s371 = sphi 0, %s357
      %s375 = sphi 0, %s375
      %s377 = sphi 0, %s375
      %s378 = sphi 0, %s377
      %s392 = sphi 0, %s378
      %s396 = sphi 0, %s396
      %s398 = sphi 0, %s396
      %s399 = sphi 0, %s398
      %s413 = sphi 0, %s399
      %s419 = sphi 0, %s421
      %s422 = sphi 0, %s419
      %s423 = sphi 0, %s422
      %s439 = sphi 0, %s423
    $region4: #{transformer_layer_forward.1} parent=1 // loop_header_branch
      %29 = sbr.rel (%p27) target = $region8
    $region5: #{transformer_layer_forward.1} parent=1 // loop_body
      %s31 = ssub.s32 %s26, 1
      %s32 = ssub.s32 %s26, 2
      %s33 = sadd.s32 %s26, 1
      %s34 = ssub.s32 %s26, %s33
      %p35 = scmp.eq.s32.totalorder %s34, 0
      %s37 = sadd.s32 %s36, 1
      %s38 = scalar_select %p35, %s36, %s37
      %p41 = pneg %p35
      %p42 = scmp.eq.s32.totalorder %s26, 1
      %p43 = por %p41, %p42
      %p44 = scmp.ne.s32.totalorder %s36, %s39
      %p45 = scmp.eq.s32.totalorder %s26, 0
      %p46 = por %p44, %p45
      %p47 = scmp.ne.s32.totalorder %s36, %s39
      %p48 = scmp.eq.s32.totalorder %s31, 1
      %p49 = por %p47, %p48
      %p50 = scmp.ne.s32.totalorder %s39, %s40
      %p51 = scmp.eq.s32.totalorder %s31, 0
      %p52 = por %p50, %p51
      %p53 = scmp.ne.s32.totalorder %s39, %s40
      %p54 = scmp.eq.s32.totalorder %s32, 1
      %p55 = por %p53, %p54
      %p57 = scmp.ne.s32.totalorder %s40, %s56
      %p58 = scmp.eq.s32.totalorder %s32, 0
      %p59 = por %p57, %p58
      %s61 = sadd.s32 %s60, 1
      %p64 = scmp.eq.s32.totalorder %s26, 1
      %p65 = scmp.ne.s32.totalorder %s60, %s62
      %p66 = scmp.eq.s32.totalorder %s26, 0
      %p67 = por %p65, %p66
      %p68 = scmp.ne.s32.totalorder %s60, %s62
      %p69 = scmp.eq.s32.totalorder %s31, 1
      %p70 = por %p68, %p69
      %p71 = scmp.ne.s32.totalorder %s62, %s63
      %p72 = scmp.eq.s32.totalorder %s31, 0
      %p73 = por %p71, %p72
      %p74 = scmp.ne.s32.totalorder %s62, %s63
      %p75 = scmp.eq.s32.totalorder %s32, 1
      %p76 = por %p74, %p75
      %p78 = scmp.ne.s32.totalorder %s63, %s77
      %p79 = scmp.eq.s32.totalorder %s32, 0
      %p80 = por %p78, %p79
      %s82 = sadd.s32 %s81, 1
      %p85 = scmp.eq.s32.totalorder %s26, 1
      %p86 = scmp.ne.s32.totalorder %s81, %s83
      %p87 = scmp.eq.s32.totalorder %s26, 0
      %p88 = por %p86, %p87
      %p89 = scmp.ne.s32.totalorder %s81, %s83
      %p90 = scmp.eq.s32.totalorder %s31, 1
      %p91 = por %p89, %p90
      %p92 = scmp.ne.s32.totalorder %s83, %s84
      %p93 = scmp.eq.s32.totalorder %s31, 0
      %p94 = por %p92, %p93
      %p95 = scmp.ne.s32.totalorder %s83, %s84
      %p96 = scmp.eq.s32.totalorder %s32, 1
      %p97 = por %p95, %p96
      %p99 = scmp.ne.s32.totalorder %s84, %s98
      %p100 = scmp.eq.s32.totalorder %s32, 0
      %p101 = por %p99, %p100
      %s103 = sadd.s32 %s102, 1
      %p106 = scmp.eq.s32.totalorder %s26, 1
      %p107 = scmp.ne.s32.totalorder %s102, %s104
      %p108 = scmp.eq.s32.totalorder %s26, 0
      %p109 = por %p107, %p108
      %p110 = scmp.ne.s32.totalorder %s102, %s104
      %p111 = scmp.eq.s32.totalorder %s31, 1
      %p112 = por %p110, %p111
      %p113 = scmp.ne.s32.totalorder %s104, %s105
      %p114 = scmp.eq.s32.totalorder %s31, 0
      %p115 = por %p113, %p114
      %p116 = scmp.ne.s32.totalorder %s104, %s105
      %p117 = scmp.eq.s32.totalorder %s32, 1
      %p118 = por %p116, %p117
      %p120 = scmp.ne.s32.totalorder %s105, %s119
      %p121 = scmp.eq.s32.totalorder %s32, 0
      %p122 = por %p120, %p121
      %s124 = sadd.s32 %s123, 1
      %p127 = scmp.eq.s32.totalorder %s26, 1
      %p128 = scmp.ne.s32.totalorder %s123, %s125
      %p129 = scmp.eq.s32.totalorder %s26, 0
      %p130 = por %p128, %p129
      %p131 = scmp.ne.s32.totalorder %s123, %s125
      %p132 = scmp.eq.s32.totalorder %s31, 1
      %p133 = por %p131, %p132
      %p134 = scmp.ne.s32.totalorder %s125, %s126
      %p135 = scmp.eq.s32.totalorder %s31, 0
      %p136 = por %p134, %p135
      %p137 = scmp.ne.s32.totalorder %s125, %s126
      %p138 = scmp.eq.s32.totalorder %s32, 1
      %p139 = por %p137, %p138
      %p141 = scmp.ne.s32.totalorder %s126, %s140
      %p142 = scmp.eq.s32.totalorder %s32, 0
      %p143 = por %p141, %p142
      %s145 = sadd.s32 %s144, 1
      %p148 = scmp.eq.s32.totalorder %s26, 1
      %p149 = scmp.ne.s32.totalorder %s144, %s146
      %p150 = scmp.eq.s32.totalorder %s26, 0
      %p151 = por %p149, %p150
      %p152 = scmp.ne.s32.totalorder %s144, %s146
      %p153 = scmp.eq.s32.totalorder %s31, 1
      %p154 = por %p152, %p153
      %p155 = scmp.ne.s32.totalorder %s146, %s147
      %p156 = scmp.eq.s32.totalorder %s31, 0
      %p157 = por %p155, %p156
      %p158 = scmp.ne.s32.totalorder %s146, %s147
      %p159 = scmp.eq.s32.totalorder %s32, 1
      %p160 = por %p158, %p159
      %p162 = scmp.ne.s32.totalorder %s147, %s161
      %p163 = scmp.eq.s32.totalorder %s32, 0
      %p164 = por %p162, %p163
      %s166 = sadd.s32 %s165, 1
      %p169 = scmp.eq.s32.totalorder %s26, 1
      %p170 = scmp.ne.s32.totalorder %s165, %s167
      %p171 = scmp.eq.s32.totalorder %s26, 0
      %p172 = por %p170, %p171
      %p173 = scmp.ne.s32.totalorder %s165, %s167
      %p174 = scmp.eq.s32.totalorder %s31, 1
      %p175 = por %p173, %p174
      %p176 = scmp.ne.s32.totalorder %s167, %s168
      %p177 = scmp.eq.s32.totalorder %s31, 0
      %p178 = por %p176, %p177
      %p179 = scmp.ne.s32.totalorder %s167, %s168
      %p180 = scmp.eq.s32.totalorder %s32, 1
      %p181 = por %p179, %p180
      %p183 = scmp.ne.s32.totalorder %s168, %s182
      %p184 = scmp.eq.s32.totalorder %s32, 0
      %p185 = por %p183, %p184
      %s187 = sadd.s32 %s186, 1
      %p190 = scmp.eq.s32.totalorder %s26, 1
      %p191 = scmp.ne.s32.totalorder %s186, %s188
      %p192 = scmp.eq.s32.totalorder %s26, 0
      %p193 = por %p191, %p192
      %p194 = scmp.ne.s32.totalorder %s186, %s188
      %p195 = scmp.eq.s32.totalorder %s31, 1
      %p196 = por %p194, %p195
      %p197 = scmp.ne.s32.totalorder %s188, %s189
      %p198 = scmp.eq.s32.totalorder %s31, 0
      %p199 = por %p197, %p198
      %p200 = scmp.ne.s32.totalorder %s188, %s189
      %p201 = scmp.eq.s32.totalorder %s32, 1
      %p202 = por %p200, %p201
      %p204 = scmp.ne.s32.totalorder %s189, %s203
      %p205 = scmp.eq.s32.totalorder %s32, 0
      %p206 = por %p204, %p205
      %s208 = sadd.s32 %s207, 1
      %p211 = scmp.eq.s32.totalorder %s26, 1
      %p212 = scmp.ne.s32.totalorder %s207, %s209
      %p213 = scmp.eq.s32.totalorder %s26, 0
      %p214 = por %p212, %p213
      %p215 = scmp.ne.s32.totalorder %s207, %s209
      %p216 = scmp.eq.s32.totalorder %s31, 1
      %p217 = por %p215, %p216
      %p218 = scmp.ne.s32.totalorder %s209, %s210
      %p219 = scmp.eq.s32.totalorder %s31, 0
      %p220 = por %p218, %p219
      %p221 = scmp.ne.s32.totalorder %s209, %s210
      %p222 = scmp.eq.s32.totalorder %s32, 1
      %p223 = por %p221, %p222
      %p225 = scmp.ne.s32.totalorder %s210, %s224
      %p226 = scmp.eq.s32.totalorder %s32, 0
      %p227 = por %p225, %p226
      %s229 = sadd.s32 %s228, 1
      %p232 = scmp.eq.s32.totalorder %s26, 1
      %p233 = scmp.ne.s32.totalorder %s228, %s230
      %p234 = scmp.eq.s32.totalorder %s26, 0
      %p235 = por %p233, %p234
      %p236 = scmp.ne.s32.totalorder %s228, %s230
      %p237 = scmp.eq.s32.totalorder %s31, 1
      %p238 = por %p236, %p237
      %p239 = scmp.ne.s32.totalorder %s230, %s231
      %p240 = scmp.eq.s32.totalorder %s31, 0
      %p241 = por %p239, %p240
      %p242 = scmp.ne.s32.totalorder %s230, %s231
      %p243 = scmp.eq.s32.totalorder %s32, 1
      %p244 = por %p242, %p243
      %p246 = scmp.ne.s32.totalorder %s231, %s245
      %p247 = scmp.eq.s32.totalorder %s32, 0
      %p248 = por %p246, %p247
      %s250 = sadd.s32 %s249, 1
      %p253 = scmp.eq.s32.totalorder %s26, 1
      %p254 = scmp.ne.s32.totalorder %s249, %s251
      %p255 = scmp.eq.s32.totalorder %s26, 0
      %p256 = por %p254, %p255
      %p257 = scmp.ne.s32.totalorder %s249, %s251
      %p258 = scmp.eq.s32.totalorder %s31, 1
      %p259 = por %p257, %p258
      %p260 = scmp.ne.s32.totalorder %s251, %s252
      %p261 = scmp.eq.s32.totalorder %s31, 0
      %p262 = por %p260, %p261
      %p263 = scmp.ne.s32.totalorder %s251, %s252
      %p264 = scmp.eq.s32.totalorder %s32, 1
      %p265 = por %p263, %p264
      %p267 = scmp.ne.s32.totalorder %s252, %s266
      %p268 = scmp.eq.s32.totalorder %s32, 0
      %p269 = por %p267, %p268
      %s271 = sadd.s32 %s270, 1
      %p274 = scmp.eq.s32.totalorder %s26, 1
      %p275 = scmp.ne.s32.totalorder %s270, %s272
      %p276 = scmp.eq.s32.totalorder %s26, 0
      %p277 = por %p275, %p276
      %p278 = scmp.ne.s32.totalorder %s270, %s272
      %p279 = scmp.eq.s32.totalorder %s31, 1
      %p280 = por %p278, %p279
      %p281 = scmp.ne.s32.totalorder %s272, %s273
      %p282 = scmp.eq.s32.totalorder %s31, 0
      %p283 = por %p281, %p282
      %p284 = scmp.ne.s32.totalorder %s272, %s273
      %p285 = scmp.eq.s32.totalorder %s32, 1
      %p286 = por %p284, %p285
      %p288 = scmp.ne.s32.totalorder %s273, %s287
      %p289 = scmp.eq.s32.totalorder %s32, 0
      %p290 = por %p288, %p289
      %s292 = sadd.s32 %s291, 1
      %p295 = scmp.eq.s32.totalorder %s26, 1
      %p296 = scmp.ne.s32.totalorder %s291, %s293
      %p297 = scmp.eq.s32.totalorder %s26, 0
      %p298 = por %p296, %p297
      %p299 = scmp.ne.s32.totalorder %s291, %s293
      %p300 = scmp.eq.s32.totalorder %s31, 1
      %p301 = por %p299, %p300
      %p302 = scmp.ne.s32.totalorder %s293, %s294
      %p303 = scmp.eq.s32.totalorder %s31, 0
      %p304 = por %p302, %p303
      %p305 = scmp.ne.s32.totalorder %s293, %s294
      %p306 = scmp.eq.s32.totalorder %s32, 1
      %p307 = por %p305, %p306
      %p309 = scmp.ne.s32.totalorder %s294, %s308
      %p310 = scmp.eq.s32.totalorder %s32, 0
      %p311 = por %p309, %p310
      %s313 = sadd.s32 %s312, 1
      %p316 = scmp.eq.s32.totalorder %s26, 1
      %p317 = scmp.ne.s32.totalorder %s312, %s314
      %p318 = scmp.eq.s32.totalorder %s26, 0
      %p319 = por %p317, %p318
      %p320 = scmp.ne.s32.totalorder %s312, %s314
      %p321 = scmp.eq.s32.totalorder %s31, 1
      %p322 = por %p320, %p321
      %p323 = scmp.ne.s32.totalorder %s314, %s315
      %p324 = scmp.eq.s32.totalorder %s31, 0
      %p325 = por %p323, %p324
      %p326 = scmp.ne.s32.totalorder %s314, %s315
      %p327 = scmp.eq.s32.totalorder %s32, 1
      %p328 = por %p326, %p327
      %p330 = scmp.ne.s32.totalorder %s315, %s329
      %p331 = scmp.eq.s32.totalorder %s32, 0
      %p332 = por %p330, %p331
      %s334 = sadd.s32 %s333, 1
      %p337 = scmp.eq.s32.totalorder %s26, 1
      %p338 = scmp.ne.s32.totalorder %s333, %s335
      %p339 = scmp.eq.s32.totalorder %s26, 0
      %p340 = por %p338, %p339
      %p341 = scmp.ne.s32.totalorder %s333, %s335
      %p342 = scmp.eq.s32.totalorder %s31, 1
      %p343 = por %p341, %p342
      %p344 = scmp.ne.s32.totalorder %s335, %s336
      %p345 = scmp.eq.s32.totalorder %s31, 0
      %p346 = por %p344, %p345
      %p347 = scmp.ne.s32.totalorder %s335, %s336
      %p348 = scmp.eq.s32.totalorder %s32, 1
      %p349 = por %p347, %p348
      %p351 = scmp.ne.s32.totalorder %s336, %s350
      %p352 = scmp.eq.s32.totalorder %s32, 0
      %p353 = por %p351, %p352
      %s355 = sadd.s32 %s354, 1
      %p358 = scmp.eq.s32.totalorder %s26, 1
      %p359 = scmp.ne.s32.totalorder %s354, %s356
      %p360 = scmp.eq.s32.totalorder %s26, 0
      %p361 = por %p359, %p360
      %p362 = scmp.ne.s32.totalorder %s354, %s356
      %p363 = scmp.eq.s32.totalorder %s31, 1
      %p364 = por %p362, %p363
      %p365 = scmp.ne.s32.totalorder %s356, %s357
      %p366 = scmp.eq.s32.totalorder %s31, 0
      %p367 = por %p365, %p366
      %p368 = scmp.ne.s32.totalorder %s356, %s357
      %p369 = scmp.eq.s32.totalorder %s32, 1
      %p370 = por %p368, %p369
      %p372 = scmp.ne.s32.totalorder %s357, %s371
      %p373 = scmp.eq.s32.totalorder %s32, 0
      %p374 = por %p372, %p373
      %s376 = sadd.s32 %s375, 1
      %p379 = scmp.eq.s32.totalorder %s26, 1
      %p380 = scmp.ne.s32.totalorder %s375, %s377
      %p381 = scmp.eq.s32.totalorder %s26, 0
      %p382 = por %p380, %p381
      %p383 = scmp.ne.s32.totalorder %s375, %s377
      %p384 = scmp.eq.s32.totalorder %s31, 1
      %p385 = por %p383, %p384
      %p386 = scmp.ne.s32.totalorder %s377, %s378
      %p387 = scmp.eq.s32.totalorder %s31, 0
      %p388 = por %p386, %p387
      %p389 = scmp.ne.s32.totalorder %s377, %s378
      %p390 = scmp.eq.s32.totalorder %s32, 1
      %p391 = por %p389, %p390
      %p393 = scmp.ne.s32.totalorder %s378, %s392
      %p394 = scmp.eq.s32.totalorder %s32, 0
      %p395 = por %p393, %p394
      %s397 = sadd.s32 %s396, 1
      %p400 = scmp.eq.s32.totalorder %s26, 1
      %p401 = scmp.ne.s32.totalorder %s396, %s398
      %p402 = scmp.eq.s32.totalorder %s26, 0
      %p403 = por %p401, %p402
      %p404 = scmp.ne.s32.totalorder %s396, %s398
      %p405 = scmp.eq.s32.totalorder %s31, 1
      %p406 = por %p404, %p405
      %p407 = scmp.ne.s32.totalorder %s398, %s399
      %p408 = scmp.eq.s32.totalorder %s31, 0
      %p409 = por %p407, %p408
      %p410 = scmp.ne.s32.totalorder %s398, %s399
      %p411 = scmp.eq.s32.totalorder %s32, 1
      %p412 = por %p410, %p411
      %p414 = scmp.ne.s32.totalorder %s399, %s413
      %p415 = scmp.eq.s32.totalorder %s32, 0
      %p416 = por %p414, %p415
      %s417 = ssub.s32 %s26, %s33
      %p418 = scmp.eq.s32.totalorder %s417, 0
      %s420 = sadd.s32 %s419, 1
      %s421 = scalar_select %p418, %s419, %s420
      %p424 = pneg %p418
      %p425 = scmp.eq.s32.totalorder %s26, 1
      %p426 = por %p424, %p425
      %p427 = scmp.ne.s32.totalorder %s419, %s422
      %p428 = scmp.eq.s32.totalorder %s26, 0
      %p429 = por %p427, %p428
      %p430 = scmp.ne.s32.totalorder %s419, %s422
      %p431 = scmp.eq.s32.totalorder %s31, 1
      %p432 = por %p430, %p431
      %p433 = scmp.ne.s32.totalorder %s422, %s423
      %p434 = scmp.eq.s32.totalorder %s31, 0
      %p435 = por %p433, %p434
      %p436 = scmp.ne.s32.totalorder %s422, %s423
      %p437 = scmp.eq.s32.totalorder %s32, 1
      %p438 = por %p436, %p437
      %p440 = scmp.ne.s32.totalorder %s423, %s439
      %p441 = scmp.eq.s32.totalorder %s32, 0
      %p442 = por %p440, %p441
      %p443 = scmp.le.s32.totalorder 1, %s26
      %p444 = scmp.lt.s32.totalorder %s26, 3
      %p445 = pnand %p443, %p444
      %p446 = pneg %p445
      // Predicated region
      $region9: #{transformer_layer_forward.1} parent=5 // pred_check
        _
      $region10: #{transformer_layer_forward.1} parent=5 // pred_check_branch
        %448 = sbr.rel (%p445) target = $region12
      $region11: #{transformer_layer_forward.1} parent=5 // pred_region
        %s449 = ssub.s32 %s26, 1
        // Predicated region
        $region13: #{transformer_layer_forward.1} parent=11 // pred_check
          %p450 = pneg %p73
        $region14: #{transformer_layer_forward.1} parent=11 // pred_check_branch
          %452 = sbr.rel (%p450) target = $region16
        $region15: #{transformer_layer_forward.1} parent=11 // pred_region
          _
        $region16: #{transformer_layer_forward.1} parent=11 // pred_fallthru
          _
        // Predicated region
        $region17: #{transformer_layer_forward.1} parent=11 // pred_check
          %p453 = pneg %p94
        $region18: #{transformer_layer_forward.1} parent=11 // pred_check_branch
          %455 = sbr.rel (%p453) target = $region20
        $region19: #{transformer_layer_forward.1} parent=11 // pred_region
          %457 = vsyncadd [#allocation4], 0
          %s458 = sshll.u32 %s2, 4
          %s459 = int_to_ptr.hbm [resolvable:$true] %s458
          %s460 = sshll.u32 [#allocation3], 4
          %s461 = int_to_ptr.vmem [resolvable:$true] %s460
          %466 = dma.hbm_to_vmem [thread:$0]  %s459, 512, %s461, [#allocation4], 128, 128, 8
        $region20: #{transformer_layer_forward.1} parent=11 // pred_fallthru
          _
        // Predicated region
        $region21: #{transformer_layer_forward.1} parent=11 // pred_check
          %p467 = pneg %p115
        $region22: #{transformer_layer_forward.1} parent=11 // pred_check_branch
          %469 = sbr.rel (%p467) target = $region24
        $region23: #{transformer_layer_forward.1} parent=11 // pred_region
          _
        $region24: #{transformer_layer_forward.1} parent=11 // pred_fallthru
          _
        // Predicated region
        $region25: #{transformer_layer_forward.1} parent=11 // pred_check
          %p470 = pneg %p136
        $region26: #{transformer_layer_forward.1} parent=11 // pred_check_branch
          %472 = sbr.rel (%p470) target = $region28
        $region27: #{transformer_layer_forward.1} parent=11 // pred_region
          _
        $region28: #{transformer_layer_forward.1} parent=11 // pred_fallthru
          _
        // Predicated region
        $region29: #{transformer_layer_forward.1} parent=11 // pred_check
          %p473 = pneg %p157
        $region30: #{transformer_layer_forward.1} parent=11 // pred_check_branch
          %475 = sbr.rel (%p473) target = $region32
        $region31: #{transformer_layer_forward.1} parent=11 // pred_region
          _
        $region32: #{transformer_layer_forward.1} parent=11 // pred_fallthru
          _
        // Predicated region
        $region33: #{transformer_layer_forward.1} parent=11 // pred_check
          %p476 = pneg %p178
        $region34: #{transformer_layer_forward.1} parent=11 // pred_check_branch
          %478 = sbr.rel (%p476) target = $region36
        $region35: #{transformer_layer_forward.1} parent=11 // pred_region
          _
        $region36: #{transformer_layer_forward.1} parent=11 // pred_fallthru
          _
        // Predicated region
        $region37: #{transformer_layer_forward.1} parent=11 // pred_check
          %p479 = pneg %p199
        $region38: #{transformer_layer_forward.1} parent=11 // pred_check_branch
          %481 = sbr.rel (%p479) target = $region40
        $region39: #{transformer_layer_forward.1} parent=11 // pred_region
          _
        $region40: #{transformer_layer_forward.1} parent=11 // pred_fallthru
          _
        // Predicated region
        $region41: #{transformer_layer_forward.1} parent=11 // pred_check
          %p482 = pneg %p220
        $region42: #{transformer_layer_forward.1} parent=11 // pred_check_branch
          %484 = sbr.rel (%p482) target = $region44
        $region43: #{transformer_layer_forward.1} parent=11 // pred_region
          _
        $region44: #{transformer_layer_forward.1} parent=11 // pred_fallthru
          _
        // Predicated region
        $region45: #{transformer_layer_forward.1} parent=11 // pred_check
          %p485 = pneg %p241
        $region46: #{transformer_layer_forward.1} parent=11 // pred_check_branch
          %487 = sbr.rel (%p485) target = $region48
        $region47: #{transformer_layer_forward.1} parent=11 // pred_region
          _
        $region48: #{transformer_layer_forward.1} parent=11 // pred_fallthru
          _
        // Predicated region
        $region49: #{transformer_layer_forward.1} parent=11 // pred_check
          %p488 = pneg %p262
        $region50: #{transformer_layer_forward.1} parent=11 // pred_check_branch
          %490 = sbr.rel (%p488) target = $region52
        $region51: #{transformer_layer_forward.1} parent=11 // pred_region
          _
        $region52: #{transformer_layer_forward.1} parent=11 // pred_fallthru
          _
        // Predicated region
        $region53: #{transformer_layer_forward.1} parent=11 // pred_check
          %p491 = pneg %p283
        $region54: #{transformer_layer_forward.1} parent=11 // pred_check_branch
          %493 = sbr.rel (%p491) target = $region56
        $region55: #{transformer_layer_forward.1} parent=11 // pred_region
          _
        $region56: #{transformer_layer_forward.1} parent=11 // pred_fallthru
          _
        // Predicated region
        $region57: #{transformer_layer_forward.1} parent=11 // pred_check
          %p494 = pneg %p304
        $region58: #{transformer_layer_forward.1} parent=11 // pred_check_branch
          %496 = sbr.rel (%p494) target = $region60
        $region59: #{transformer_layer_forward.1} parent=11 // pred_region
          _
        $region60: #{transformer_layer_forward.1} parent=11 // pred_fallthru
          _
        // Predicated region
        $region61: #{transformer_layer_forward.1} parent=11 // pred_check
          %p497 = pneg %p325
        $region62: #{transformer_layer_forward.1} parent=11 // pred_check_branch
          %499 = sbr.rel (%p497) target = $region64
        $region63: #{transformer_layer_forward.1} parent=11 // pred_region
          _
        $region64: #{transformer_layer_forward.1} parent=11 // pred_fallthru
          _
        // Predicated region
        $region65: #{transformer_layer_forward.1} parent=11 // pred_check
          %p500 = pneg %p346
        $region66: #{transformer_layer_forward.1} parent=11 // pred_check_branch
          %502 = sbr.rel (%p500) target = $region68
        $region67: #{transformer_layer_forward.1} parent=11 // pred_region
          _
        $region68: #{transformer_layer_forward.1} parent=11 // pred_fallthru
          _
        // Predicated region
        $region69: #{transformer_layer_forward.1} parent=11 // pred_check
          %p503 = pneg %p367
        $region70: #{transformer_layer_forward.1} parent=11 // pred_check_branch
          %505 = sbr.rel (%p503) target = $region72
        $region71: #{transformer_layer_forward.1} parent=11 // pred_region
          _
        $region72: #{transformer_layer_forward.1} parent=11 // pred_fallthru
          _
        // Predicated region
        $region73: #{transformer_layer_forward.1} parent=11 // pred_check
          %p506 = pneg %p388
        $region74: #{transformer_layer_forward.1} parent=11 // pred_check_branch
          %508 = sbr.rel (%p506) target = $region76
        $region75: #{transformer_layer_forward.1} parent=11 // pred_region
          %510 = vsyncadd [#allocation6], 0
          %s511 = sshll.u32 %s16, 4
          %s512 = int_to_ptr.hbm [resolvable:$true] %s511
          %s513 = sshll.u32 [#allocation5], 4
          %s514 = int_to_ptr.vmem [resolvable:$true] %s513
          %519 = dma.hbm_to_vmem [thread:$0]  %s512, 512, %s514, [#allocation6], 128, 128, 8
        $region76: #{transformer_layer_forward.1} parent=11 // pred_fallthru
          _
        // Predicated region
        $region77: #{transformer_layer_forward.1} parent=11 // pred_check
          %p520 = pneg %p409
        $region78: #{transformer_layer_forward.1} parent=11 // pred_check_branch
          %522 = sbr.rel (%p520) target = $region80
        $region79: #{transformer_layer_forward.1} parent=11 // pred_region
          _
        $region80: #{transformer_layer_forward.1} parent=11 // pred_fallthru
          _
      $region12: #{transformer_layer_forward.1} parent=5 // pred_fallthru
        _
      %p523 = scmp.lt.s32.totalorder %s26, 2
      // Predicated region
      $region81: #{transformer_layer_forward.1} parent=5 // pred_check
        %p524 = pneg %p523
      $region82: #{transformer_layer_forward.1} parent=5 // pred_check_branch
        %526 = sbr.rel (%p524) target = $region84
      $region83: #{transformer_layer_forward.1} parent=5 // pred_region
        // Predicated region
        $region85: #{transformer_layer_forward.1} parent=83 // pred_check
          %p527 = pneg %p46
        $region86: #{transformer_layer_forward.1} parent=83 // pred_check_branch
          %529 = sbr.rel (%p527) target = $region88
        $region87: #{transformer_layer_forward.1} parent=83 // pred_region
          %p530 = scmp.lt.s32.totalorder %s26, 1
          %s531 = scalar_select %p530, %s26, 1
          %s532 = smul.addr %s531, 8
          %s533 = scalar_lea.vmem %s0, %s532
        $region88: #{transformer_layer_forward.1} parent=83 // pred_fallthru
          _
      $region84: #{transformer_layer_forward.1} parent=5 // pred_fallthru
        _
      %p534 = scmp.le.s32.totalorder 1, %s26
      %p535 = scmp.lt.s32.totalorder %s26, 3
      %p536 = pnand %p534, %p535
      %p537 = pneg %p536
      // Predicated region
      $region89: #{transformer_layer_forward.1} parent=5 // pred_check
        _
      $region90: #{transformer_layer_forward.1} parent=5 // pred_check_branch
        %539 = sbr.rel (%p536) target = $region92
      $region91: #{transformer_layer_forward.1} parent=5 // pred_region
        %s540 = ssub.s32 %s26, 1
        // Predicated region
        $region93: #{transformer_layer_forward.1} parent=91 // pred_check
          %p541 = pneg %p94
        $region94: #{transformer_layer_forward.1} parent=91 // pred_check_branch
          %543 = sbr.rel (%p541) target = $region96
        $region95: #{transformer_layer_forward.1} parent=91 // pred_region
          %545 = dma.done [#allocation4], 512
        $region96: #{transformer_layer_forward.1} parent=91 // pred_fallthru
          _
        // Predicated region
        $region97: #{transformer_layer_forward.1} parent=91 // pred_check
          %p546 = pneg %p388
        $region98: #{transformer_layer_forward.1} parent=91 // pred_check_branch
          %548 = sbr.rel (%p546) target = $region100
        $region99: #{transformer_layer_forward.1} parent=91 // pred_region
          %550 = dma.done [#allocation6], 512
        $region100: #{transformer_layer_forward.1} parent=91 // pred_fallthru
          _
        %p551 = scmp.lt.s32.totalorder %s31, 1
        %s552 = scalar_select %p551, %s31, 1
        %s553 = smul.addr %s552, 8
        %s554 = scalar_lea.vmem %s0, %s553
        %p555 = pneg %p52
        %p556 = pneg %p49
        %p557 = pneg %p73
        %p558 = pneg %p70
        %p559 = pneg %p94
        %p560 = pneg %p91
        %p561 = pneg %p115
        %p562 = pneg %p112
        %p563 = pneg %p136
        %p564 = pneg %p133
        %p565 = pneg %p157
        %p566 = pneg %p154
        %p567 = pneg %p178
        %p568 = pneg %p175
        %p569 = pneg %p199
        %p570 = pneg %p196
        %p571 = pneg %p220
        %p572 = pneg %p217
        %p573 = pneg %p241
        %p574 = pneg %p238
        %p575 = pneg %p262
        %p576 = pneg %p259
        %p577 = pneg %p283
        %p578 = pneg %p280
        %p579 = pneg %p304
        %p580 = pneg %p301
        %p581 = pneg %p325
        %p582 = pneg %p322
        %p583 = pneg %p346
        %p584 = pneg %p343
        %p585 = pneg %p367
        %p586 = pneg %p364
        %p587 = pneg %p388
        %p588 = pneg %p385
        %p589 = pneg %p409
        %p590 = pneg %p406
        %p591 = pneg %p435
        %p592 = pneg %p432
        %p593 = scmp.lt.s32.totalorder %s31, 1
        %s594 = scalar_select %p593, %s31, 1
        %s595 = smul.addr %s594, 8
        %s596 = scalar_lea.vmem %s18, %s595
        %p597 = scmp.lt.s32.totalorder %s31, 1
        %s598 = scalar_select %p597, %s31, 1
        %s599 = smul.addr %s598, 8
        %s600 = scalar_lea.vmem %s0, %s599
        %p601 = scmp.lt.s32.totalorder %s31, 1
        %s602 = scalar_select %p601, %s31, 1
        %s603 = smul.addr %s602, 8
        %s604 = scalar_lea.vmem %s18, %s603
        %v605 = vld [vmem:[%s600] sm:$0xff]
        %v606 = vld [vmem:[#allocation3] sm:$0xff]
        %v607 = vld [vmem:[#allocation3 + $0x8] sm:$0xff]
        %v608 = vld [vmem:[#allocation3 + $0x10] sm:$0xff]
        %v609 = vld [vmem:[#allocation3 + $0x18] sm:$0x3]
        %v610 = vld [vmem:[%s3] sm:$0x1]
        %v612 = vperm.slane %v610, 0
        %vm614 = vcmask 211968
        %v616 = vsel %vm614, %v605, 0
        %vm618 = vcmask 1041408
        %v620 = vsel %vm618, %v609, 0
        %622 = vmatpush.msra.mxu0 0.0
        %623 = vmatpush.msra.mxu0 0.0
        %624 = vmatpush.msra.mxu0 0.0
        %625 = vmatpush.msra.mxu0 0.0
        %626 = vmatpush.msra.mxu0 0.0
        %627 = vmatpush.msra.mxu0 0.0
        %628 = vmatpush.msra.mxu0 0.0
        %629 = vmatpush.msra.mxu0 0.0
        %630 = vmatpush.msra.mxu0 0.0
        %631 = vmatpush.msra.mxu0 0.0
        %632 = vmatpush.msra.mxu0 0.0
        %633 = vmatpush.msra.mxu0 0.0
        %634 = vmatpush.msra.mxu0 %v620
        %635 = vmatpush.msra.mxu0 %v608
        %636 = vmatpush.msra.mxu0 %v607
        %637 = vmatpush.msra.mxu0 %v606
        %638 = vmatmul.f32.gmra.mxu0 %v616
        %v639 = vpop.f32.mrf.mxu0
        %v640 = vadd.f32 %v612, %v639
        %641 = vdwg.mxu0
        %v642 = vld [vmem:[%s1] sm:$0xff]
        %v643 = vadd.f32 %v640, %v642
        %v644 = vld [vmem:[%s4] sm:$0xff]
        %v645 = vld [vmem:[%s4 + $0x8] sm:$0xff]
        %v646 = vld [vmem:[%s4 + $0x10] sm:$0xff]
        %v647 = vld [vmem:[%s4 + $0x18] sm:$0xff]
        %v648 = vld [vmem:[%s5] sm:$0x1]
        %v650 = vperm.slane %v648, 0
        %vm652 = vcmask 261120
        %v654 = vsel %vm652, %v643, 0
        %656 = vmatpush.msra.mxu0 0.0
        %657 = vmatpush.msra.mxu0 0.0
        %658 = vmatpush.msra.mxu0 0.0
        %659 = vmatpush.msra.mxu0 0.0
        %660 = vmatpush.msra.mxu0 0.0
        %661 = vmatpush.msra.mxu0 0.0
        %662 = vmatpush.msra.mxu0 0.0
        %663 = vmatpush.msra.mxu0 0.0
        %664 = vmatpush.msra.mxu0 0.0
        %665 = vmatpush.msra.mxu0 0.0
        %666 = vmatpush.msra.mxu0 0.0
        %667 = vmatpush.msra.mxu0 0.0
        %668 = vmatpush.msra.mxu0 %v647
        %669 = vmatpush.msra.mxu0 %v646
        %670 = vmatpush.msra.mxu0 %v645
        %671 = vmatpush.msra.mxu0 %v644
        %672 = vmatmul.f32.gmra.mxu0 %v654
        %v673 = vpop.f32.mrf.mxu0
        %v674 = vadd.f32 %v650, %v673
        %675 = vdwg.mxu0
        %v676 = vmul.f32 %v674, 0.35355338
        %678 = vrot.lane.b32.xlu0 %v674, 96
        %v679 = vpop.permute.xlu0 %678
        %vm680 = vcmask 64512
        %v682 = vsel %vm680, %v676, 0
        %v684 = vsel %vm680, %v679, 0
        %686 = vmatpush.xpose.msra.mxu0 0.0
        %687 = vmatpush.xpose.msra.mxu0 0.0
        %688 = vmatpush.xpose.msra.mxu0 0.0
        %689 = vmatpush.xpose.msra.mxu0 0.0
        %690 = vmatpush.xpose.msra.mxu0 0.0
        %691 = vmatpush.xpose.msra.mxu0 0.0
        %692 = vmatpush.xpose.msra.mxu0 0.0
        %693 = vmatpush.xpose.msra.mxu0 0.0
        %694 = vmatpush.xpose.msra.mxu0 0.0
        %695 = vmatpush.xpose.msra.mxu0 0.0
        %696 = vmatpush.xpose.msra.mxu0 0.0
        %697 = vmatpush.xpose.msra.mxu0 0.0
        %698 = vmatpush.xpose.msra.mxu0 0.0
        %699 = vmatpush.xpose.msra.mxu0 0.0
        %700 = vmatpush.xpose.msra.mxu0 0.0
        %701 = vmatpush.xpose.msra.mxu0 %v684
        %702 = vmatmul.f32.gmra.mxu0 %v682
        %v703 = vpop.f32.mrf.mxu0
        %v704 = vadd.f32 0.0, %v703
        %705 = vdwg.mxu0
        %v706 = vsel %vm680, %v704, -inf
        %707 = vmax.xlane.f32.xlu0 %v706
        %v708 = vpop.xlane.xlu0 %707
        %v709 = vsub.f32 %v704, %v708
        %v710 = vmul.f32 %v709, 1.442695
        %v711 = vpow.pop %v710
        %v712 = vsel %vm680, %v711, 0.0
        %713 = vadd.xlane.f32.xlu0 %v712
        %v714 = vpop.xlane.xlu0 %713
        %v715 = vrcp.pop %v714
        %v716 = vmul.f32 %v714, %v715
        %v717 = vsub.f32 1.0, %v716
        %v718 = vmul.f32 %v715, %v717
        %v719 = vadd.f32 %v715, %v718
        %vm720 = vweird.f32 %v714
        %vm721 = vweird.f32 %v715
        %vm722 = vmor %vm720, %vm721
        %v723 = vsel %vm722, %v715, %v719
        %v724 = vand.u32 2147483647, %v714
        %vm725 = vcmp.eq.f32.partialorder %v724, 8.507059e+37
        %v726 = vand.u32 %v714, 2147483648
        %v727 = vor.u32 1.1754944e-38, %v726
        %v728 = vsel %vm725, %v727, %v723
        %v729 = vmul.f32 %v711, %v728
        %730 = vrot.lane.b32.xlu0 %v674, 64
        %v731 = vpop.permute.xlu0 %730
        %v734 = vsel %vm680, %v729, 0
        %736 = vmatpush.msra.mxu0 0.0
        %737 = vmatpush.msra.mxu0 0.0
        %738 = vmatpush.msra.mxu0 0.0
        %739 = vmatpush.msra.mxu0 0.0
        %740 = vmatpush.msra.mxu0 0.0
        %741 = vmatpush.msra.mxu0 0.0
        %742 = vmatpush.msra.mxu0 0.0
        %743 = vmatpush.msra.mxu0 0.0
        %744 = vmatpush.msra.mxu0 0.0
        %745 = vmatpush.msra.mxu0 0.0
        %746 = vmatpush.msra.mxu0 0.0
        %747 = vmatpush.msra.mxu0 0.0
        %748 = vmatpush.msra.mxu0 0.0
        %749 = vmatpush.msra.mxu0 0.0
        %750 = vmatpush.msra.mxu0 0.0
        %751 = vmatpush.msra.mxu0 %v731
        %752 = vmatmul.f32.gmra.mxu0 %v734
        %v753 = vpop.f32.mrf.mxu0
        %v754 = vadd.f32 0.0, %v753
        %755 = vdwg.mxu0
        %756 = vst.msk [vmem:[#allocation2] sm:$0xff] %vm680, %v754
        %757 = vrot.lane.b32.xlu0 %v676, 120
        %v758 = vpop.permute.xlu0 %757
        %759 = vrot.lane.b32.xlu0 %v674, 88
        %v760 = vpop.permute.xlu0 %759
        %v761 = vsel %vm680, %v758, 0
        %v763 = vsel %vm680, %v760, 0
        %765 = vmatpush.xpose.msra.mxu0 0.0
        %766 = vmatpush.xpose.msra.mxu0 0.0
        %767 = vmatpush.xpose.msra.mxu0 0.0
        %768 = vmatpush.xpose.msra.mxu0 0.0
        %769 = vmatpush.xpose.msra.mxu0 0.0
        %770 = vmatpush.xpose.msra.mxu0 0.0
        %771 = vmatpush.xpose.msra.mxu0 0.0
        %772 = vmatpush.xpose.msra.mxu0 0.0
        %773 = vmatpush.xpose.msra.mxu0 0.0
        %774 = vmatpush.xpose.msra.mxu0 0.0
        %775 = vmatpush.xpose.msra.mxu0 0.0
        %776 = vmatpush.xpose.msra.mxu0 0.0
        %777 = vmatpush.xpose.msra.mxu0 0.0
        %778 = vmatpush.xpose.msra.mxu0 0.0
        %779 = vmatpush.xpose.msra.mxu0 0.0
        %780 = vmatpush.xpose.msra.mxu0 %v763
        %781 = vmatmul.f32.gmra.mxu0 %v761
        %v782 = vpop.f32.mrf.mxu0
        %v783 = vadd.f32 0.0, %v782
        %784 = vdwg.mxu0
        %v785 = vsel %vm680, %v783, -inf
        %786 = vmax.xlane.f32.xlu0 %v785
        %v787 = vpop.xlane.xlu0 %786
        %v788 = vsub.f32 %v783, %v787
        %v789 = vmul.f32 %v788, 1.442695
        %v790 = vpow.pop %v789
        %v791 = vsel %vm680, %v790, 0.0
        %792 = vadd.xlane.f32.xlu0 %v791
        %v793 = vpop.xlane.xlu0 %792
        %v794 = vrcp.pop %v793
        %v795 = vmul.f32 %v793, %v794
        %v796 = vsub.f32 1.0, %v795
        %v797 = vmul.f32 %v794, %v796
        %v798 = vadd.f32 %v794, %v797
        %vm799 = vweird.f32 %v793
        %vm800 = vweird.f32 %v794
        %vm801 = vmor %vm799, %vm800
        %v802 = vsel %vm801, %v794, %v798
        %v803 = vand.u32 2147483647, %v793
        %vm804 = vcmp.eq.f32.partialorder %v803, 8.507059e+37
        %v805 = vand.u32 %v793, 2147483648
        %v806 = vor.u32 1.1754944e-38, %v805
        %v807 = vsel %vm804, %v806, %v802
        %v808 = vmul.f32 %v790, %v807
        %809 = vrot.lane.b32.xlu0 %v674, 56
        %v810 = vpop.permute.xlu0 %809
        %v813 = vsel %vm680, %v808, 0
        %815 = vmatpush.msra.mxu0 0.0
        %816 = vmatpush.msra.mxu0 0.0
        %817 = vmatpush.msra.mxu0 0.0
        %818 = vmatpush.msra.mxu0 0.0
        %819 = vmatpush.msra.mxu0 0.0
        %820 = vmatpush.msra.mxu0 0.0
        %821 = vmatpush.msra.mxu0 0.0
        %822 = vmatpush.msra.mxu0 0.0
        %823 = vmatpush.msra.mxu0 0.0
        %824 = vmatpush.msra.mxu0 0.0
        %825 = vmatpush.msra.mxu0 0.0
        %826 = vmatpush.msra.mxu0 0.0
        %827 = vmatpush.msra.mxu0 0.0
        %828 = vmatpush.msra.mxu0 0.0
        %829 = vmatpush.msra.mxu0 0.0
        %830 = vmatpush.msra.mxu0 %v810
        %831 = vmatmul.f32.gmra.mxu0 %v813
        %v832 = vpop.f32.mrf.mxu0
        %v833 = vadd.f32 0.0, %v832
        %834 = vdwg.mxu0
        %836 = vrot.lane.b32.xlu0 %v833, 8
        %v837 = vpop.permute.xlu0 %836
        %vm839 = vcmask 130112
        %840 = vst.msk [vmem:[#allocation2] sm:$0xff] %vm839, %v837
        %841 = vrot.lane.b32.xlu0 %v676, 112
        %v842 = vpop.permute.xlu0 %841
        %843 = vrot.lane.b32.xlu0 %v674, 80
        %v844 = vpop.permute.xlu0 %843
        %v845 = vsel %vm680, %v842, 0
        %v847 = vsel %vm680, %v844, 0
        %849 = vmatpush.xpose.msra.mxu0 0.0
        %850 = vmatpush.xpose.msra.mxu0 0.0
        %851 = vmatpush.xpose.msra.mxu0 0.0
        %852 = vmatpush.xpose.msra.mxu0 0.0
        %853 = vmatpush.xpose.msra.mxu0 0.0
        %854 = vmatpush.xpose.msra.mxu0 0.0
        %855 = vmatpush.xpose.msra.mxu0 0.0
        %856 = vmatpush.xpose.msra.mxu0 0.0
        %857 = vmatpush.xpose.msra.mxu0 0.0
        %858 = vmatpush.xpose.msra.mxu0 0.0
        %859 = vmatpush.xpose.msra.mxu0 0.0
        %860 = vmatpush.xpose.msra.mxu0 0.0
        %861 = vmatpush.xpose.msra.mxu0 0.0
        %862 = vmatpush.xpose.msra.mxu0 0.0
        %863 = vmatpush.xpose.msra.mxu0 0.0
        %864 = vmatpush.xpose.msra.mxu0 %v847
        %865 = vmatmul.f32.gmra.mxu0 %v845
        %v866 = vpop.f32.mrf.mxu0
        %v867 = vadd.f32 0.0, %v866
        %868 = vdwg.mxu0
        %v869 = vsel %vm680, %v867, -inf
        %870 = vmax.xlane.f32.xlu0 %v869
        %v871 = vpop.xlane.xlu0 %870
        %v872 = vsub.f32 %v867, %v871
        %v873 = vmul.f32 %v872, 1.442695
        %v874 = vpow.pop %v873
        %v875 = vsel %vm680, %v874, 0.0
        %876 = vadd.xlane.f32.xlu0 %v875
        %v877 = vpop.xlane.xlu0 %876
        %v878 = vrcp.pop %v877
        %v879 = vmul.f32 %v877, %v878
        %v880 = vsub.f32 1.0, %v879
        %v881 = vmul.f32 %v878, %v880
        %v882 = vadd.f32 %v878, %v881
        %vm883 = vweird.f32 %v877
        %vm884 = vweird.f32 %v878
        %vm885 = vmor %vm883, %vm884
        %v886 = vsel %vm885, %v878, %v882
        %v887 = vand.u32 2147483647, %v877
        %vm888 = vcmp.eq.f32.partialorder %v887, 8.507059e+37
        %v889 = vand.u32 %v877, 2147483648
        %v890 = vor.u32 1.1754944e-38, %v889
        %v891 = vsel %vm888, %v890, %v886
        %v892 = vmul.f32 %v874, %v891
        %893 = vrot.lane.b32.xlu0 %v674, 48
        %v894 = vpop.permute.xlu0 %893
        %v897 = vsel %vm680, %v892, 0
        %899 = vmatpush.msra.mxu0 0.0
        %900 = vmatpush.msra.mxu0 0.0
        %901 = vmatpush.msra.mxu0 0.0
        %902 = vmatpush.msra.mxu0 0.0
        %903 = vmatpush.msra.mxu0 0.0
        %904 = vmatpush.msra.mxu0 0.0
        %905 = vmatpush.msra.mxu0 0.0
        %906 = vmatpush.msra.mxu0 0.0
        %907 = vmatpush.msra.mxu0 0.0
        %908 = vmatpush.msra.mxu0 0.0
        %909 = vmatpush.msra.mxu0 0.0
        %910 = vmatpush.msra.mxu0 0.0
        %911 = vmatpush.msra.mxu0 0.0
        %912 = vmatpush.msra.mxu0 0.0
        %913 = vmatpush.msra.mxu0 0.0
        %914 = vmatpush.msra.mxu0 %v894
        %915 = vmatmul.f32.gmra.mxu0 %v897
        %v916 = vpop.f32.mrf.mxu0
        %v917 = vadd.f32 0.0, %v916
        %918 = vdwg.mxu0
        %920 = vrot.lane.b32.xlu0 %v917, 16
        %v921 = vpop.permute.xlu0 %920
        %vm923 = vcmask 195712
        %924 = vst.msk [vmem:[#allocation2] sm:$0xff] %vm923, %v921
        %925 = vrot.lane.b32.xlu0 %v676, 104
        %v926 = vpop.permute.xlu0 %925
        %927 = vrot.lane.b32.xlu0 %v674, 72
        %v928 = vpop.permute.xlu0 %927
        %v929 = vsel %vm680, %v926, 0
        %v931 = vsel %vm680, %v928, 0
        %933 = vmatpush.xpose.msra.mxu0 0.0
        %934 = vmatpush.xpose.msra.mxu0 0.0
        %935 = vmatpush.xpose.msra.mxu0 0.0
        %936 = vmatpush.xpose.msra.mxu0 0.0
        %937 = vmatpush.xpose.msra.mxu0 0.0
        %938 = vmatpush.xpose.msra.mxu0 0.0
        %939 = vmatpush.xpose.msra.mxu0 0.0
        %940 = vmatpush.xpose.msra.mxu0 0.0
        %941 = vmatpush.xpose.msra.mxu0 0.0
        %942 = vmatpush.xpose.msra.mxu0 0.0
        %943 = vmatpush.xpose.msra.mxu0 0.0
        %944 = vmatpush.xpose.msra.mxu0 0.0
        %945 = vmatpush.xpose.msra.mxu0 0.0
        %946 = vmatpush.xpose.msra.mxu0 0.0
        %947 = vmatpush.xpose.msra.mxu0 0.0
        %948 = vmatpush.xpose.msra.mxu0 %v931
        %949 = vmatmul.f32.gmra.mxu0 %v929
        %v950 = vpop.f32.mrf.mxu0
        %v951 = vadd.f32 0.0, %v950
        %952 = vdwg.mxu0
        %v953 = vsel %vm680, %v951, -inf
        %954 = vmax.xlane.f32.xlu0 %v953
        %v955 = vpop.xlane.xlu0 %954
        %v956 = vsub.f32 %v951, %v955
        %v957 = vmul.f32 %v956, 1.442695
        %v958 = vpow.pop %v957
        %v959 = vsel %vm680, %v958, 0.0
        %960 = vadd.xlane.f32.xlu0 %v959
        %v961 = vpop.xlane.xlu0 %960
        %v962 = vrcp.pop %v961
        %v963 = vmul.f32 %v961, %v962
        %v964 = vsub.f32 1.0, %v963
        %v965 = vmul.f32 %v962, %v964
        %v966 = vadd.f32 %v962, %v965
        %vm967 = vweird.f32 %v961
        %vm968 = vweird.f32 %v962
        %vm969 = vmor %vm967, %vm968
        %v970 = vsel %vm969, %v962, %v966
        %v971 = vand.u32 2147483647, %v961
        %vm972 = vcmp.eq.f32.partialorder %v971, 8.507059e+37
        %v973 = vand.u32 %v961, 2147483648
        %v974 = vor.u32 1.1754944e-38, %v973
        %v975 = vsel %vm972, %v974, %v970
        %v976 = vmul.f32 %v958, %v975
        %977 = vrot.lane.b32.xlu0 %v674, 40
        %v978 = vpop.permute.xlu0 %977
        %v981 = vsel %vm680, %v976, 0
        %983 = vmatpush.msra.mxu0 0.0
        %984 = vmatpush.msra.mxu0 0.0
        %985 = vmatpush.msra.mxu0 0.0
        %986 = vmatpush.msra.mxu0 0.0
        %987 = vmatpush.msra.mxu0 0.0
        %988 = vmatpush.msra.mxu0 0.0
        %989 = vmatpush.msra.mxu0 0.0
        %990 = vmatpush.msra.mxu0 0.0
        %991 = vmatpush.msra.mxu0 0.0
        %992 = vmatpush.msra.mxu0 0.0
        %993 = vmatpush.msra.mxu0 0.0
        %994 = vmatpush.msra.mxu0 0.0
        %995 = vmatpush.msra.mxu0 0.0
        %996 = vmatpush.msra.mxu0 0.0
        %997 = vmatpush.msra.mxu0 0.0
        %998 = vmatpush.msra.mxu0 %v978
        %999 = vmatmul.f32.gmra.mxu0 %v981
        %v1000 = vpop.f32.mrf.mxu0
        %v1001 = vadd.f32 0.0, %v1000
        %1002 = vdwg.mxu0
        %1004 = vrot.lane.b32.xlu0 %v1001, 24
        %v1005 = vpop.permute.xlu0 %1004
        %vm1007 = vcmask 261312
        %1008 = vst.msk [vmem:[#allocation2] sm:$0xff] %vm1007, %v1005
        %v1009 = vld [vmem:[#allocation2] sm:$0xff]
        %v1010 = vld [vmem:[%s6] sm:$0xff]
        %v1011 = vld [vmem:[%s6 + $0x8] sm:$0xff]
        %v1012 = vld [vmem:[%s6 + $0x10] sm:$0xff]
        %v1013 = vld [vmem:[%s6 + $0x18] sm:$0xff]
        %v1014 = vld [vmem:[%s7] sm:$0x1]
        %v1016 = vperm.slane %v1014, 0
        %v1019 = vsel %vm652, %v1009, 0
        %1021 = vmatpush.msra.mxu0 0.0
        %1022 = vmatpush.msra.mxu0 0.0
        %1023 = vmatpush.msra.mxu0 0.0
        %1024 = vmatpush.msra.mxu0 0.0
        %1025 = vmatpush.msra.mxu0 0.0
        %1026 = vmatpush.msra.mxu0 0.0
        %1027 = vmatpush.msra.mxu0 0.0
        %1028 = vmatpush.msra.mxu0 0.0
        %1029 = vmatpush.msra.mxu0 0.0
        %1030 = vmatpush.msra.mxu0 0.0
        %1031 = vmatpush.msra.mxu0 0.0
        %1032 = vmatpush.msra.mxu0 0.0
        %1033 = vmatpush.msra.mxu0 %v1013
        %1034 = vmatpush.msra.mxu0 %v1012
        %1035 = vmatpush.msra.mxu0 %v1011
        %1036 = vmatpush.msra.mxu0 %v1010
        %1037 = vmatmul.f32.gmra.mxu0 %v1019
        %v1038 = vpop.f32.mrf.mxu0
        %v1039 = vadd.f32 %v1016, %v1038
        %1040 = vdwg.mxu0
        %v1041 = vadd.f32 %v643, %v1039
        %v1042 = vld [vmem:[%s8] sm:$0x1]
        %v1043 = vld [vmem:[%s9] sm:$0x1]
        %v1044 = vsel %vm652, %v1041, 0.0
        %1045 = vadd.xlane.f32.xlu0 %v1044
        %v1046 = vpop.xlane.xlu0 %1045
        %v1047 = vrcp.pop 32.0
        %v1048 = vmul.f32 32.0, %v1047
        %v1049 = vsub.f32 1.0, %v1048
        %v1050 = vmul.f32 %v1047, %v1049
        %v1051 = vadd.f32 %v1047, %v1050
        %vm1052 = vweird.f32 %v1047
        %v1053 = vsel %vm1052, %v1047, %v1051
        %v1054 = vmul.f32 %v1046, %v1053
        %v1055 = vsub.f32 %v1041, %v1054
        %v1056 = vmul.f32 %v1055, %v1055
        %v1057 = vsel %vm652, %v1056, 0.0
        %1058 = vadd.xlane.f32.xlu0 %v1057
        %v1059 = vpop.xlane.xlu0 %1058
        %v1060 = vmul.f32 %v1059, %v1053
        %v1061 = vadd.f32 %v1060, 1e-05
        %v1062 = vrsqrt.pop %v1061
        %v1063 = vmul.f32 %v1062, %v1061
        %v1064 = vmul.f32 %v1063, %v1062
        %v1065 = vmul.f32 0.5, %v1064
        %v1066 = vsub.f32 1.5, %v1065
        %v1067 = vmul.f32 %v1062, %v1066
        %vm1068 = vweird.f32 %v1061
        %vm1069 = vweird.f32 %v1062
        %vm1070 = vmor %vm1068, %vm1069
        %v1071 = vsel %vm1070, %v1062, %v1067
        %v1072 = vmul.f32 %v1055, %v1071
        %v1074 = vperm.slane %v1042, 0
        %v1076 = vmul.f32 %v1072, %v1074
        %v1078 = vperm.slane %v1043, 0
        %v1080 = vadd.f32 %v1076, %v1078
        %v1081 = vld [vmem:[%s10] sm:$0xff]
        %v1082 = vld [vmem:[%s10 + $0x8] sm:$0xff]
        %v1083 = vld [vmem:[%s10 + $0x10] sm:$0xff]
        %v1084 = vld [vmem:[%s10 + $0x18] sm:$0xff]
        %v1085 = vld [vmem:[%s11] sm:$0x1]
        %v1087 = vperm.slane %v1085, 0
        %v1090 = vsel %vm652, %v1080, 0
        %1092 = vmatpush.msra.mxu0 0.0
        %1093 = vmatpush.msra.mxu0 0.0
        %1094 = vmatpush.msra.mxu0 0.0
        %1095 = vmatpush.msra.mxu0 0.0
        %1096 = vmatpush.msra.mxu0 0.0
        %1097 = vmatpush.msra.mxu0 0.0
        %1098 = vmatpush.msra.mxu0 0.0
        %1099 = vmatpush.msra.mxu0 0.0
        %1100 = vmatpush.msra.mxu0 0.0
        %1101 = vmatpush.msra.mxu0 0.0
        %1102 = vmatpush.msra.mxu0 0.0
        %1103 = vmatpush.msra.mxu0 0.0
        %1104 = vmatpush.msra.mxu0 %v1084
        %1105 = vmatpush.msra.mxu0 %v1083
        %1106 = vmatpush.msra.mxu0 %v1082
        %1107 = vmatpush.msra.mxu0 %v1081
        %1108 = vmatmul.f32.gmra.mxu0 %v1090
        %v1109 = vpop.f32.mrf.mxu0
        %v1110 = vadd.f32 %v1087, %v1109
        %1111 = vdwg.mxu0
        %v1112 = vmax.f32 %v1110, 0.0
        %v1113 = vld [vmem:[%s12] sm:$0xff]
        %v1114 = vld [vmem:[%s12 + $0x8] sm:$0xff]
        %v1115 = vld [vmem:[%s12 + $0x10] sm:$0xff]
        %v1116 = vld [vmem:[%s12 + $0x18] sm:$0xff]
        %v1117 = vld [vmem:[%s12 + $0x20] sm:$0xff]
        %v1118 = vld [vmem:[%s12 + $0x28] sm:$0xff]
        %v1119 = vld [vmem:[%s12 + $0x30] sm:$0xff]
        %v1120 = vld [vmem:[%s12 + $0x38] sm:$0xff]
        %v1121 = vld [vmem:[%s13] sm:$0x1]
        %v1123 = vperm.slane %v1121, 0
        %vm1125 = vcmask 523264
        %v1127 = vsel %vm1125, %v1112, 0
        %1129 = vmatpush.msra.mxu0 0.0
        %1130 = vmatpush.msra.mxu0 0.0
        %1131 = vmatpush.msra.mxu0 0.0
        %1132 = vmatpush.msra.mxu0 0.0
        %1133 = vmatpush.msra.mxu0 0.0
        %1134 = vmatpush.msra.mxu0 0.0
        %1135 = vmatpush.msra.mxu0 0.0
        %1136 = vmatpush.msra.mxu0 0.0
        %1137 = vmatpush.msra.mxu0 %v1120
        %1138 = vmatpush.msra.mxu0 %v1119
        %1139 = vmatpush.msra.mxu0 %v1118
        %1140 = vmatpush.msra.mxu0 %v1117
        %1141 = vmatpush.msra.mxu0 %v1116
        %1142 = vmatpush.msra.mxu0 %v1115
        %1143 = vmatpush.msra.mxu0 %v1114
        %1144 = vmatpush.msra.mxu0 %v1113
        %1145 = vmatmul.f32.gmra.mxu0 %v1127
        %v1146 = vpop.f32.mrf.mxu0
        %v1147 = vadd.f32 %v1123, %v1146
        %1148 = vdwg.mxu0
        %v1149 = vadd.f32 %v1080, %v1147
        %v1150 = vld [vmem:[%s14] sm:$0x1]
        %v1151 = vld [vmem:[%s15] sm:$0x1]
        %v1152 = vsel %vm652, %v1149, 0.0
        %1153 = vadd.xlane.f32.xlu0 %v1152
        %v1154 = vpop.xlane.xlu0 %1153
        %v1155 = vmul.f32 %v1154, %v1053
        %v1156 = vsub.f32 %v1149, %v1155
        %v1157 = vmul.f32 %v1156, %v1156
        %v1158 = vsel %vm652, %v1157, 0.0
        %1159 = vadd.xlane.f32.xlu0 %v1158
        %v1160 = vpop.xlane.xlu0 %1159
        %v1161 = vmul.f32 %v1160, %v1053
        %v1162 = vadd.f32 %v1161, 1e-05
        %v1163 = vrsqrt.pop %v1162
        %v1164 = vmul.f32 %v1163, %v1162
        %v1165 = vmul.f32 %v1164, %v1163
        %v1166 = vmul.f32 0.5, %v1165
        %v1167 = vsub.f32 1.5, %v1166
        %v1168 = vmul.f32 %v1163, %v1167
        %vm1169 = vweird.f32 %v1162
        %vm1170 = vweird.f32 %v1163
        %vm1171 = vmor %vm1169, %vm1170
        %v1172 = vsel %vm1171, %v1163, %v1168
        %v1173 = vmul.f32 %v1156, %v1172
        %v1175 = vperm.slane %v1150, 0
        %v1177 = vmul.f32 %v1173, %v1175
        %v1179 = vperm.slane %v1151, 0
        %v1181 = vadd.f32 %v1177, %v1179
        %s1182 = scalar_lea.vmem %s4, 32
        %v1183 = vld [vmem:[%s1182] sm:$0xff]
        %v1184 = vld [vmem:[%s1182 + $0x8] sm:$0xff]
        %v1185 = vld [vmem:[%s1182 + $0x10] sm:$0xff]
        %v1186 = vld [vmem:[%s1182 + $0x18] sm:$0xff]
        %s1187 = scalar_lea.vmem %s5, 1
        %v1188 = vld [vmem:[%s1187] sm:$0x1]
        %v1190 = vperm.slane %v1188, 0
        %v1193 = vsel %vm652, %v1181, 0
        %1195 = vmatpush.msra.mxu0 0.0
        %1196 = vmatpush.msra.mxu0 0.0
        %1197 = vmatpush.msra.mxu0 0.0
        %1198 = vmatpush.msra.mxu0 0.0
        %1199 = vmatpush.msra.mxu0 0.0
        %1200 = vmatpush.msra.mxu0 0.0
        %1201 = vmatpush.msra.mxu0 0.0
        %1202 = vmatpush.msra.mxu0 0.0
        %1203 = vmatpush.msra.mxu0 0.0
        %1204 = vmatpush.msra.mxu0 0.0
        %1205 = vmatpush.msra.mxu0 0.0
        %1206 = vmatpush.msra.mxu0 0.0
        %1207 = vmatpush.msra.mxu0 %v1186
        %1208 = vmatpush.msra.mxu0 %v1185
        %1209 = vmatpush.msra.mxu0 %v1184
        %1210 = vmatpush.msra.mxu0 %v1183
        %1211 = vmatmul.f32.gmra.mxu0 %v1193
        %v1212 = vpop.f32.mrf.mxu0
        %v1213 = vadd.f32 %v1190, %v1212
        %1214 = vdwg.mxu0
        %v1215 = vmul.f32 %v1213, 0.35355338
        %1217 = vrot.lane.b32.xlu0 %v1213, 96
        %v1218 = vpop.permute.xlu0 %1217
        %v1220 = vsel %vm680, %v1215, 0
        %v1222 = vsel %vm680, %v1218, 0
        %1224 = vmatpush.xpose.msra.mxu0 0.0
        %1225 = vmatpush.xpose.msra.mxu0 0.0
        %1226 = vmatpush.xpose.msra.mxu0 0.0
        %1227 = vmatpush.xpose.msra.mxu0 0.0
        %1228 = vmatpush.xpose.msra.mxu0 0.0
        %1229 = vmatpush.xpose.msra.mxu0 0.0
        %1230 = vmatpush.xpose.msra.mxu0 0.0
        %1231 = vmatpush.xpose.msra.mxu0 0.0
        %1232 = vmatpush.xpose.msra.mxu0 0.0
        %1233 = vmatpush.xpose.msra.mxu0 0.0
        %1234 = vmatpush.xpose.msra.mxu0 0.0
        %1235 = vmatpush.xpose.msra.mxu0 0.0
        %1236 = vmatpush.xpose.msra.mxu0 0.0
        %1237 = vmatpush.xpose.msra.mxu0 0.0
        %1238 = vmatpush.xpose.msra.mxu0 0.0
        %1239 = vmatpush.xpose.msra.mxu0 %v1222
        %1240 = vmatmul.f32.gmra.mxu0 %v1220
        %v1241 = vpop.f32.mrf.mxu0
        %v1242 = vadd.f32 0.0, %v1241
        %1243 = vdwg.mxu0
        %v1244 = vsel %vm680, %v1242, -inf
        %1245 = vmax.xlane.f32.xlu0 %v1244
        %v1246 = vpop.xlane.xlu0 %1245
        %v1247 = vsub.f32 %v1242, %v1246
        %v1248 = vmul.f32 %v1247, 1.442695
        %v1249 = vpow.pop %v1248
        %v1250 = vsel %vm680, %v1249, 0.0
        %1251 = vadd.xlane.f32.xlu0 %v1250
        %v1252 = vpop.xlane.xlu0 %1251
        %v1253 = vrcp.pop %v1252
        %v1254 = vmul.f32 %v1252, %v1253
        %v1255 = vsub.f32 1.0, %v1254
        %v1256 = vmul.f32 %v1253, %v1255
        %v1257 = vadd.f32 %v1253, %v1256
        %vm1258 = vweird.f32 %v1252
        %vm1259 = vweird.f32 %v1253
        %vm1260 = vmor %vm1258, %vm1259
        %v1261 = vsel %vm1260, %v1253, %v1257
        %v1262 = vand.u32 2147483647, %v1252
        %vm1263 = vcmp.eq.f32.partialorder %v1262, 8.507059e+37
        %v1264 = vand.u32 %v1252, 2147483648
        %v1265 = vor.u32 1.1754944e-38, %v1264
        %v1266 = vsel %vm1263, %v1265, %v1261
        %v1267 = vmul.f32 %v1249, %v1266
        %1268 = vrot.lane.b32.xlu0 %v1213, 64
        %v1269 = vpop.permute.xlu0 %1268
        %v1272 = vsel %vm680, %v1267, 0
        %1274 = vmatpush.msra.mxu0 0.0
        %1275 = vmatpush.msra.mxu0 0.0
        %1276 = vmatpush.msra.mxu0 0.0
        %1277 = vmatpush.msra.mxu0 0.0
        %1278 = vmatpush.msra.mxu0 0.0
        %1279 = vmatpush.msra.mxu0 0.0
        %1280 = vmatpush.msra.mxu0 0.0
        %1281 = vmatpush.msra.mxu0 0.0
        %1282 = vmatpush.msra.mxu0 0.0
        %1283 = vmatpush.msra.mxu0 0.0
        %1284 = vmatpush.msra.mxu0 0.0
        %1285 = vmatpush.msra.mxu0 0.0
        %1286 = vmatpush.msra.mxu0 0.0
        %1287 = vmatpush.msra.mxu0 0.0
        %1288 = vmatpush.msra.mxu0 0.0
        %1289 = vmatpush.msra.mxu0 %v1269
        %1290 = vmatmul.f32.gmra.mxu0 %v1272
        %v1291 = vpop.f32.mrf.mxu0
        %v1292 = vadd.f32 0.0, %v1291
        %1293 = vdwg.mxu0
        %1294 = vst.msk [vmem:[#allocation2] sm:$0xff] %vm680, %v1292
        %1295 = vrot.lane.b32.xlu0 %v1215, 120
        %v1296 = vpop.permute.xlu0 %1295
        %1297 = vrot.lane.b32.xlu0 %v1213, 88
        %v1298 = vpop.permute.xlu0 %1297
        %v1299 = vsel %vm680, %v1296, 0
        %v1301 = vsel %vm680, %v1298, 0
        %1303 = vmatpush.xpose.msra.mxu0 0.0
        %1304 = vmatpush.xpose.msra.mxu0 0.0
        %1305 = vmatpush.xpose.msra.mxu0 0.0
        %1306 = vmatpush.xpose.msra.mxu0 0.0
        %1307 = vmatpush.xpose.msra.mxu0 0.0
        %1308 = vmatpush.xpose.msra.mxu0 0.0
        %1309 = vmatpush.xpose.msra.mxu0 0.0
        %1310 = vmatpush.xpose.msra.mxu0 0.0
        %1311 = vmatpush.xpose.msra.mxu0 0.0
        %1312 = vmatpush.xpose.msra.mxu0 0.0
        %1313 = vmatpush.xpose.msra.mxu0 0.0
        %1314 = vmatpush.xpose.msra.mxu0 0.0
        %1315 = vmatpush.xpose.msra.mxu0 0.0
        %1316 = vmatpush.xpose.msra.mxu0 0.0
        %1317 = vmatpush.xpose.msra.mxu0 0.0
        %1318 = vmatpush.xpose.msra.mxu0 %v1301
        %1319 = vmatmul.f32.gmra.mxu0 %v1299
        %v1320 = vpop.f32.mrf.mxu0
        %v1321 = vadd.f32 0.0, %v1320
        %1322 = vdwg.mxu0
        %v1323 = vsel %vm680, %v1321, -inf
        %1324 = vmax.xlane.f32.xlu0 %v1323
        %v1325 = vpop.xlane.xlu0 %1324
        %v1326 = vsub.f32 %v1321, %v1325
        %v1327 = vmul.f32 %v1326, 1.442695
        %v1328 = vpow.pop %v1327
        %v1329 = vsel %vm680, %v1328, 0.0
        %1330 = vadd.xlane.f32.xlu0 %v1329
        %v1331 = vpop.xlane.xlu0 %1330
        %v1332 = vrcp.pop %v1331
        %v1333 = vmul.f32 %v1331, %v1332
        %v1334 = vsub.f32 1.0, %v1333
        %v1335 = vmul.f32 %v1332, %v1334
        %v1336 = vadd.f32 %v1332, %v1335
        %vm1337 = vweird.f32 %v1331
        %vm1338 = vweird.f32 %v1332
        %vm1339 = vmor %vm1337, %vm1338
        %v1340 = vsel %vm1339, %v1332, %v1336
        %v1341 = vand.u32 2147483647, %v1331
        %vm1342 = vcmp.eq.f32.partialorder %v1341, 8.507059e+37
        %v1343 = vand.u32 %v1331, 2147483648
        %v1344 = vor.u32 1.1754944e-38, %v1343
        %v1345 = vsel %vm1342, %v1344, %v1340
        %v1346 = vmul.f32 %v1328, %v1345
        %1347 = vrot.lane.b32.xlu0 %v1213, 56
        %v1348 = vpop.permute.xlu0 %1347
        %v1351 = vsel %vm680, %v1346, 0
        %1353 = vmatpush.msra.mxu0 0.0
        %1354 = vmatpush.msra.mxu0 0.0
        %1355 = vmatpush.msra.mxu0 0.0
        %1356 = vmatpush.msra.mxu0 0.0
        %1357 = vmatpush.msra.mxu0 0.0
        %1358 = vmatpush.msra.mxu0 0.0
        %1359 = vmatpush.msra.mxu0 0.0
        %1360 = vmatpush.msra.mxu0 0.0
        %1361 = vmatpush.msra.mxu0 0.0
        %1362 = vmatpush.msra.mxu0 0.0
        %1363 = vmatpush.msra.mxu0 0.0
        %1364 = vmatpush.msra.mxu0 0.0
        %1365 = vmatpush.msra.mxu0 0.0
        %1366 = vmatpush.msra.mxu0 0.0
        %1367 = vmatpush.msra.mxu0 0.0
        %1368 = vmatpush.msra.mxu0 %v1348
        %1369 = vmatmul.f32.gmra.mxu0 %v1351
        %v1370 = vpop.f32.mrf.mxu0
        %v1371 = vadd.f32 0.0, %v1370
        %1372 = vdwg.mxu0
        %1374 = vrot.lane.b32.xlu0 %v1371, 8
        %v1375 = vpop.permute.xlu0 %1374
        %1377 = vst.msk [vmem:[#allocation2] sm:$0xff] %vm839, %v1375
        %1378 = vrot.lane.b32.xlu0 %v1215, 112
        %v1379 = vpop.permute.xlu0 %1378
        %1380 = vrot.lane.b32.xlu0 %v1213, 80
        %v1381 = vpop.permute.xlu0 %1380
        %v1382 = vsel %vm680, %v1379, 0
        %v1384 = vsel %vm680, %v1381, 0
        %1386 = vmatpush.xpose.msra.mxu0 0.0
        %1387 = vmatpush.xpose.msra.mxu0 0.0
        %1388 = vmatpush.xpose.msra.mxu0 0.0
        %1389 = vmatpush.xpose.msra.mxu0 0.0
        %1390 = vmatpush.xpose.msra.mxu0 0.0
        %1391 = vmatpush.xpose.msra.mxu0 0.0
        %1392 = vmatpush.xpose.msra.mxu0 0.0
        %1393 = vmatpush.xpose.msra.mxu0 0.0
        %1394 = vmatpush.xpose.msra.mxu0 0.0
        %1395 = vmatpush.xpose.msra.mxu0 0.0
        %1396 = vmatpush.xpose.msra.mxu0 0.0
        %1397 = vmatpush.xpose.msra.mxu0 0.0
        %1398 = vmatpush.xpose.msra.mxu0 0.0
        %1399 = vmatpush.xpose.msra.mxu0 0.0
        %1400 = vmatpush.xpose.msra.mxu0 0.0
        %1401 = vmatpush.xpose.msra.mxu0 %v1384
        %1402 = vmatmul.f32.gmra.mxu0 %v1382
        %v1403 = vpop.f32.mrf.mxu0
        %v1404 = vadd.f32 0.0, %v1403
        %1405 = vdwg.mxu0
        %v1406 = vsel %vm680, %v1404, -inf
        %1407 = vmax.xlane.f32.xlu0 %v1406
        %v1408 = vpop.xlane.xlu0 %1407
        %v1409 = vsub.f32 %v1404, %v1408
        %v1410 = vmul.f32 %v1409, 1.442695
        %v1411 = vpow.pop %v1410
        %v1412 = vsel %vm680, %v1411, 0.0
        %1413 = vadd.xlane.f32.xlu0 %v1412
        %v1414 = vpop.xlane.xlu0 %1413
        %v1415 = vrcp.pop %v1414
        %v1416 = vmul.f32 %v1414, %v1415
        %v1417 = vsub.f32 1.0, %v1416
        %v1418 = vmul.f32 %v1415, %v1417
        %v1419 = vadd.f32 %v1415, %v1418
        %vm1420 = vweird.f32 %v1414
        %vm1421 = vweird.f32 %v1415
        %vm1422 = vmor %vm1420, %vm1421
        %v1423 = vsel %vm1422, %v1415, %v1419
        %v1424 = vand.u32 2147483647, %v1414
        %vm1425 = vcmp.eq.f32.partialorder %v1424, 8.507059e+37
        %v1426 = vand.u32 %v1414, 2147483648
        %v1427 = vor.u32 1.1754944e-38, %v1426
        %v1428 = vsel %vm1425, %v1427, %v1423
        %v1429 = vmul.f32 %v1411, %v1428
        %1430 = vrot.lane.b32.xlu0 %v1213, 48
        %v1431 = vpop.permute.xlu0 %1430
        %v1434 = vsel %vm680, %v1429, 0
        %1436 = vmatpush.msra.mxu0 0.0
        %1437 = vmatpush.msra.mxu0 0.0
        %1438 = vmatpush.msra.mxu0 0.0
        %1439 = vmatpush.msra.mxu0 0.0
        %1440 = vmatpush.msra.mxu0 0.0
        %1441 = vmatpush.msra.mxu0 0.0
        %1442 = vmatpush.msra.mxu0 0.0
        %1443 = vmatpush.msra.mxu0 0.0
        %1444 = vmatpush.msra.mxu0 0.0
        %1445 = vmatpush.msra.mxu0 0.0
        %1446 = vmatpush.msra.mxu0 0.0
        %1447 = vmatpush.msra.mxu0 0.0
        %1448 = vmatpush.msra.mxu0 0.0
        %1449 = vmatpush.msra.mxu0 0.0
        %1450 = vmatpush.msra.mxu0 0.0
        %1451 = vmatpush.msra.mxu0 %v1431
        %1452 = vmatmul.f32.gmra.mxu0 %v1434
        %v1453 = vpop.f32.mrf.mxu0
        %v1454 = vadd.f32 0.0, %v1453
        %1455 = vdwg.mxu0
        %1457 = vrot.lane.b32.xlu0 %v1454, 16
        %v1458 = vpop.permute.xlu0 %1457
        %1460 = vst.msk [vmem:[#allocation2] sm:$0xff] %vm923, %v1458
        %1461 = vrot.lane.b32.xlu0 %v1215, 104
        %v1462 = vpop.permute.xlu0 %1461
        %1463 = vrot.lane.b32.xlu0 %v1213, 72
        %v1464 = vpop.permute.xlu0 %1463
        %v1465 = vsel %vm680, %v1462, 0
        %v1467 = vsel %vm680, %v1464, 0
        %1469 = vmatpush.xpose.msra.mxu0 0.0
        %1470 = vmatpush.xpose.msra.mxu0 0.0
        %1471 = vmatpush.xpose.msra.mxu0 0.0
        %1472 = vmatpush.xpose.msra.mxu0 0.0
        %1473 = vmatpush.xpose.msra.mxu0 0.0
        %1474 = vmatpush.xpose.msra.mxu0 0.0
        %1475 = vmatpush.xpose.msra.mxu0 0.0
        %1476 = vmatpush.xpose.msra.mxu0 0.0
        %1477 = vmatpush.xpose.msra.mxu0 0.0
        %1478 = vmatpush.xpose.msra.mxu0 0.0
        %1479 = vmatpush.xpose.msra.mxu0 0.0
        %1480 = vmatpush.xpose.msra.mxu0 0.0
        %1481 = vmatpush.xpose.msra.mxu0 0.0
        %1482 = vmatpush.xpose.msra.mxu0 0.0
        %1483 = vmatpush.xpose.msra.mxu0 0.0
        %1484 = vmatpush.xpose.msra.mxu0 %v1467
        %1485 = vmatmul.f32.gmra.mxu0 %v1465
        %v1486 = vpop.f32.mrf.mxu0
        %v1487 = vadd.f32 0.0, %v1486
        %1488 = vdwg.mxu0
        %v1489 = vsel %vm680, %v1487, -inf
        %1490 = vmax.xlane.f32.xlu0 %v1489
        %v1491 = vpop.xlane.xlu0 %1490
        %v1492 = vsub.f32 %v1487, %v1491
        %v1493 = vmul.f32 %v1492, 1.442695
        %v1494 = vpow.pop %v1493
        %v1495 = vsel %vm680, %v1494, 0.0
        %1496 = vadd.xlane.f32.xlu0 %v1495
        %v1497 = vpop.xlane.xlu0 %1496
        %v1498 = vrcp.pop %v1497
        %v1499 = vmul.f32 %v1497, %v1498
        %v1500 = vsub.f32 1.0, %v1499
        %v1501 = vmul.f32 %v1498, %v1500
        %v1502 = vadd.f32 %v1498, %v1501
        %vm1503 = vweird.f32 %v1497
        %vm1504 = vweird.f32 %v1498
        %vm1505 = vmor %vm1503, %vm1504
        %v1506 = vsel %vm1505, %v1498, %v1502
        %v1507 = vand.u32 2147483647, %v1497
        %vm1508 = vcmp.eq.f32.partialorder %v1507, 8.507059e+37
        %v1509 = vand.u32 %v1497, 2147483648
        %v1510 = vor.u32 1.1754944e-38, %v1509
        %v1511 = vsel %vm1508, %v1510, %v1506
        %v1512 = vmul.f32 %v1494, %v1511
        %1513 = vrot.lane.b32.xlu0 %v1213, 40
        %v1514 = vpop.permute.xlu0 %1513
        %v1517 = vsel %vm680, %v1512, 0
        %1519 = vmatpush.msra.mxu0 0.0
        %1520 = vmatpush.msra.mxu0 0.0
        %1521 = vmatpush.msra.mxu0 0.0
        %1522 = vmatpush.msra.mxu0 0.0
        %1523 = vmatpush.msra.mxu0 0.0
        %1524 = vmatpush.msra.mxu0 0.0
        %1525 = vmatpush.msra.mxu0 0.0
        %1526 = vmatpush.msra.mxu0 0.0
        %1527 = vmatpush.msra.mxu0 0.0
        %1528 = vmatpush.msra.mxu0 0.0
        %1529 = vmatpush.msra.mxu0 0.0
        %1530 = vmatpush.msra.mxu0 0.0
        %1531 = vmatpush.msra.mxu0 0.0
        %1532 = vmatpush.msra.mxu0 0.0
        %1533 = vmatpush.msra.mxu0 0.0
        %1534 = vmatpush.msra.mxu0 %v1514
        %1535 = vmatmul.f32.gmra.mxu0 %v1517
        %v1536 = vpop.f32.mrf.mxu0
        %v1537 = vadd.f32 0.0, %v1536
        %1538 = vdwg.mxu0
        %1540 = vrot.lane.b32.xlu0 %v1537, 24
        %v1541 = vpop.permute.xlu0 %1540
        %1543 = vst.msk [vmem:[#allocation2] sm:$0xff] %vm1007, %v1541
        %v1544 = vld [vmem:[#allocation2] sm:$0xff]
        %s1545 = scalar_lea.vmem %s6, 32
        %v1546 = vld [vmem:[%s1545] sm:$0xff]
        %v1547 = vld [vmem:[%s1545 + $0x8] sm:$0xff]
        %v1548 = vld [vmem:[%s1545 + $0x10] sm:$0xff]
        %v1549 = vld [vmem:[%s1545 + $0x18] sm:$0xff]
        %s1550 = scalar_lea.vmem %s7, 1
        %v1551 = vld [vmem:[%s1550] sm:$0x1]
        %v1553 = vperm.slane %v1551, 0
        %v1556 = vsel %vm652, %v1544, 0
        %1558 = vmatpush.msra.mxu0 0.0
        %1559 = vmatpush.msra.mxu0 0.0
        %1560 = vmatpush.msra.mxu0 0.0
        %1561 = vmatpush.msra.mxu0 0.0
        %1562 = vmatpush.msra.mxu0 0.0
        %1563 = vmatpush.msra.mxu0 0.0
        %1564 = vmatpush.msra.mxu0 0.0
        %1565 = vmatpush.msra.mxu0 0.0
        %1566 = vmatpush.msra.mxu0 0.0
        %1567 = vmatpush.msra.mxu0 0.0
        %1568 = vmatpush.msra.mxu0 0.0
        %1569 = vmatpush.msra.mxu0 0.0
        %1570 = vmatpush.msra.mxu0 %v1549
        %1571 = vmatpush.msra.mxu0 %v1548
        %1572 = vmatpush.msra.mxu0 %v1547
        %1573 = vmatpush.msra.mxu0 %v1546
        %1574 = vmatmul.f32.gmra.mxu0 %v1556
        %v1575 = vpop.f32.mrf.mxu0
        %v1576 = vadd.f32 %v1553, %v1575
        %1577 = vdwg.mxu0
        %v1578 = vadd.f32 %v1181, %v1576
        %s1579 = scalar_lea.vmem %s8, 1
        %v1580 = vld [vmem:[%s1579] sm:$0x1]
        %s1581 = scalar_lea.vmem %s9, 1
        %v1582 = vld [vmem:[%s1581] sm:$0x1]
        %v1583 = vsel %vm652, %v1578, 0.0
        %1584 = vadd.xlane.f32.xlu0 %v1583
        %v1585 = vpop.xlane.xlu0 %1584
        %v1586 = vmul.f32 %v1585, %v1053
        %v1587 = vsub.f32 %v1578, %v1586
        %v1588 = vmul.f32 %v1587, %v1587
        %v1589 = vsel %vm652, %v1588, 0.0
        %1590 = vadd.xlane.f32.xlu0 %v1589
        %v1591 = vpop.xlane.xlu0 %1590
        %v1592 = vmul.f32 %v1591, %v1053
        %v1593 = vadd.f32 %v1592, 1e-05
        %v1594 = vrsqrt.pop %v1593
        %v1595 = vmul.f32 %v1594, %v1593
        %v1596 = vmul.f32 %v1595, %v1594
        %v1597 = vmul.f32 0.5, %v1596
        %v1598 = vsub.f32 1.5, %v1597
        %v1599 = vmul.f32 %v1594, %v1598
        %vm1600 = vweird.f32 %v1593
        %vm1601 = vweird.f32 %v1594
        %vm1602 = vmor %vm1600, %vm1601
        %v1603 = vsel %vm1602, %v1594, %v1599
        %v1604 = vmul.f32 %v1587, %v1603
        %v1606 = vperm.slane %v1580, 0
        %v1608 = vmul.f32 %v1604, %v1606
        %v1610 = vperm.slane %v1582, 0
        %v1612 = vadd.f32 %v1608, %v1610
        %s1613 = scalar_lea.vmem %s10, 32
        %v1614 = vld [vmem:[%s1613] sm:$0xff]
        %v1615 = vld [vmem:[%s1613 + $0x8] sm:$0xff]
        %v1616 = vld [vmem:[%s1613 + $0x10] sm:$0xff]
        %v1617 = vld [vmem:[%s1613 + $0x18] sm:$0xff]
        %s1618 = scalar_lea.vmem %s11, 1
        %v1619 = vld [vmem:[%s1618] sm:$0x1]
        %v1621 = vperm.slane %v1619, 0
        %v1624 = vsel %vm652, %v1612, 0
        %1626 = vmatpush.msra.mxu0 0.0
        %1627 = vmatpush.msra.mxu0 0.0
        %1628 = vmatpush.msra.mxu0 0.0
        %1629 = vmatpush.msra.mxu0 0.0
        %1630 = vmatpush.msra.mxu0 0.0
        %1631 = vmatpush.msra.mxu0 0.0
        %1632 = vmatpush.msra.mxu0 0.0
        %1633 = vmatpush.msra.mxu0 0.0
        %1634 = vmatpush.msra.mxu0 0.0
        %1635 = vmatpush.msra.mxu0 0.0
        %1636 = vmatpush.msra.mxu0 0.0
        %1637 = vmatpush.msra.mxu0 0.0
        %1638 = vmatpush.msra.mxu0 %v1617
        %1639 = vmatpush.msra.mxu0 %v1616
        %1640 = vmatpush.msra.mxu0 %v1615
        %1641 = vmatpush.msra.mxu0 %v1614
        %1642 = vmatmul.f32.gmra.mxu0 %v1624
        %v1643 = vpop.f32.mrf.mxu0
        %v1644 = vadd.f32 %v1621, %v1643
        %1645 = vdwg.mxu0
        %v1646 = vmax.f32 %v1644, 0.0
        %s1647 = scalar_lea.vmem %s12, 64
        %v1648 = vld [vmem:[%s1647] sm:$0xff]
        %v1649 = vld [vmem:[%s1647 + $0x8] sm:$0xff]
        %v1650 = vld [vmem:[%s1647 + $0x10] sm:$0xff]
        %v1651 = vld [vmem:[%s1647 + $0x18] sm:$0xff]
        %v1652 = vld [vmem:[%s1647 + $0x20] sm:$0xff]
        %v1653 = vld [vmem:[%s1647 + $0x28] sm:$0xff]
        %v1654 = vld [vmem:[%s1647 + $0x30] sm:$0xff]
        %v1655 = vld [vmem:[%s1647 + $0x38] sm:$0xff]
        %s1656 = scalar_lea.vmem %s13, 1
        %v1657 = vld [vmem:[%s1656] sm:$0x1]
        %v1659 = vperm.slane %v1657, 0
        %v1662 = vsel %vm1125, %v1646, 0
        %1664 = vmatpush.msra.mxu0 0.0
        %1665 = vmatpush.msra.mxu0 0.0
        %1666 = vmatpush.msra.mxu0 0.0
        %1667 = vmatpush.msra.mxu0 0.0
        %1668 = vmatpush.msra.mxu0 0.0
        %1669 = vmatpush.msra.mxu0 0.0
        %1670 = vmatpush.msra.mxu0 0.0
        %1671 = vmatpush.msra.mxu0 0.0
        %1672 = vmatpush.msra.mxu0 %v1655
        %1673 = vmatpush.msra.mxu0 %v1654
        %1674 = vmatpush.msra.mxu0 %v1653
        %1675 = vmatpush.msra.mxu0 %v1652
        %1676 = vmatpush.msra.mxu0 %v1651
        %1677 = vmatpush.msra.mxu0 %v1650
        %1678 = vmatpush.msra.mxu0 %v1649
        %1679 = vmatpush.msra.mxu0 %v1648
        %1680 = vmatmul.f32.gmra.mxu0 %v1662
        %v1681 = vpop.f32.mrf.mxu0
        %v1682 = vadd.f32 %v1659, %v1681
        %1683 = vdwg.mxu0
        %v1684 = vadd.f32 %v1612, %v1682
        %s1685 = scalar_lea.vmem %s14, 1
        %v1686 = vld [vmem:[%s1685] sm:$0x1]
        %s1687 = scalar_lea.vmem %s15, 1
        %v1688 = vld [vmem:[%s1687] sm:$0x1]
        %v1689 = vsel %vm652, %v1684, 0.0
        %1690 = vadd.xlane.f32.xlu0 %v1689
        %v1691 = vpop.xlane.xlu0 %1690
        %v1692 = vmul.f32 %v1691, %v1053
        %v1693 = vsub.f32 %v1684, %v1692
        %v1694 = vmul.f32 %v1693, %v1693
        %v1695 = vsel %vm652, %v1694, 0.0
        %1696 = vadd.xlane.f32.xlu0 %v1695
        %v1697 = vpop.xlane.xlu0 %1696
        %v1698 = vmul.f32 %v1697, %v1053
        %v1699 = vadd.f32 %v1698, 1e-05
        %v1700 = vrsqrt.pop %v1699
        %v1701 = vmul.f32 %v1700, %v1699
        %v1702 = vmul.f32 %v1701, %v1700
        %v1703 = vmul.f32 0.5, %v1702
        %v1704 = vsub.f32 1.5, %v1703
        %v1705 = vmul.f32 %v1700, %v1704
        %vm1706 = vweird.f32 %v1699
        %vm1707 = vweird.f32 %v1700
        %vm1708 = vmor %vm1706, %vm1707
        %v1709 = vsel %vm1708, %v1700, %v1705
        %v1710 = vmul.f32 %v1693, %v1709
        %v1712 = vperm.slane %v1686, 0
        %v1714 = vmul.f32 %v1710, %v1712
        %v1716 = vperm.slane %v1688, 0
        %v1718 = vadd.f32 %v1714, %v1716
        %v1719 = vld [vmem:[#allocation5] sm:$0xff]
        %v1720 = vld [vmem:[#allocation5 + $0x8] sm:$0xff]
        %v1721 = vld [vmem:[#allocation5 + $0x10] sm:$0xff]
        %v1722 = vld [vmem:[#allocation5 + $0x18] sm:$0xff]
        %v1723 = vld [vmem:[%s17] sm:$0x1]
        %v1725 = vperm.slane %v1723, 0
        %v1728 = vsel %vm652, %v1718, 0
        %1730 = vmatpush.msra.mxu0 0.0
        %1731 = vmatpush.msra.mxu0 0.0
        %1732 = vmatpush.msra.mxu0 0.0
        %1733 = vmatpush.msra.mxu0 0.0
        %1734 = vmatpush.msra.mxu0 0.0
        %1735 = vmatpush.msra.mxu0 0.0
        %1736 = vmatpush.msra.mxu0 0.0
        %1737 = vmatpush.msra.mxu0 0.0
        %1738 = vmatpush.msra.mxu0 0.0
        %1739 = vmatpush.msra.mxu0 0.0
        %1740 = vmatpush.msra.mxu0 0.0
        %1741 = vmatpush.msra.mxu0 0.0
        %1742 = vmatpush.msra.mxu0 %v1722
        %1743 = vmatpush.msra.mxu0 %v1721
        %1744 = vmatpush.msra.mxu0 %v1720
        %1745 = vmatpush.msra.mxu0 %v1719
        %1746 = vmatmul.f32.gmra.mxu0 %v1728
        %v1747 = vpop.f32.mrf.mxu0
        %v1748 = vadd.f32 %v1725, %v1747
        %1749 = vdwg.mxu0
        %1750 = vst [vmem:[%s604] sm:$0xff] %v1748
        %p1751 = scmp.lt.s32.totalorder %s31, 1
        %s1752 = scalar_select %p1751, %s31, 1
        %s1753 = smul.addr %s1752, 8
        %s1754 = scalar_lea.vmem %s18, %s1753
        // Predicated region
        $region101: #{transformer_layer_forward.1} parent=91 // pred_check
          %p1755 = pneg %p432
        $region102: #{transformer_layer_forward.1} parent=91 // pred_check_branch
          %1757 = sbr.rel (%p1755) target = $region104
        $region103: #{transformer_layer_forward.1} parent=91 // pred_region
          _
        $region104: #{transformer_layer_forward.1} parent=91 // pred_fallthru
          _
      $region92: #{transformer_layer_forward.1} parent=5 // pred_fallthru
        _
      %p1758 = scmp.le.s32.totalorder 2, %s26
      // Predicated region
      $region105: #{transformer_layer_forward.1} parent=5 // pred_check
        %p1759 = pneg %p1758
      $region106: #{transformer_layer_forward.1} parent=5 // pred_check_branch
        %1761 = sbr.rel (%p1759) target = $region108
      $region107: #{transformer_layer_forward.1} parent=5 // pred_region
        %s1762 = ssub.s32 %s26, 2
        // Predicated region
        $region109: #{transformer_layer_forward.1} parent=107 // pred_check
          %p1763 = pneg %p438
        $region110: #{transformer_layer_forward.1} parent=107 // pred_check_branch
          %1765 = sbr.rel (%p1763) target = $region112
        $region111: #{transformer_layer_forward.1} parent=107 // pred_region
          %p1766 = scmp.lt.s32.totalorder %s32, 1
          %s1767 = scalar_select %p1766, %s32, 1
          %s1768 = smul.addr %s1767, 8
          %s1769 = scalar_lea.vmem %s18, %s1768
        $region112: #{transformer_layer_forward.1} parent=107 // pred_fallthru
          _
      $region108: #{transformer_layer_forward.1} parent=5 // pred_fallthru
        _
    $region6: #{transformer_layer_forward.1} parent=1 // loop_footer
      %s30 = sadd.s32 1, %s26
    $region7: #{transformer_layer_forward.1} parent=1 // loop_footer_branch
      %25 = sbr.rel target = $region3
    $region8: #{transformer_layer_forward.1} parent=1 // loop_exit
      _
    %1770 = vsyncpa [#allocation4], 1
    %s1771 = scalar_lea.sflag [#allocation4], 1
    %1772 = vsyncpa %s1771, 1
    %1773 = vsyncpa [#allocation6], 1

</llo_original>
